<compile_context>
chip_gen: v6e
topology: v6e:2x2x1
jax: 0.10.0
libtpu: 0.0.40
codegen_flags: <defaults>
</compile_context>

<pallas_src>
import numpy as np
import jax
import jax.numpy as jnp
from jax.experimental import pallas as pl
from jax.experimental.pallas import tpu as pltpu


# ----------------------------------------------------------------------------
# Module configuration (mirrors ConditionalRandomFieldBlock defaults)
# ----------------------------------------------------------------------------
N_CLASSES = 4
CHANNELS = 3
GAUSSIAN_FILTER_KERNEL_SIZES = (3, 7)
GAUSSIAN_FILTER_SIGMAS = (3, 3)
BILATERAL_FILTER_KERNEL_SIZES = (5, 9)
BILATERAL_FILTER_SIGMAS = ((3, 10.0), (3, 30.0))


def gaussian_taps_1d(ksize: int, sigma: float) -> np.ndarray:
    """1-D Gaussian taps normalized over the window (outer(t, t) sums to 1)."""
    r = ksize // 2
    ax = np.arange(-r, r + 1, dtype=np.float64)
    g = np.exp(-(ax ** 2) / (2.0 * float(sigma) ** 2))
    return (g / g.sum()).astype(np.float32)


def build_filter_taps():
    """1-D taps of the 4 depthwise filters (shared across channels).

    Reproduces the torch constructor's zip-order quirk: kernel_size comes from
    `gaussian_filter_sigmas`, sigma from `gaussian_filter_kernel_sizes`.
    """
    taps = []
    for kernel_size, sigma in zip(GAUSSIAN_FILTER_SIGMAS, GAUSSIAN_FILTER_KERNEL_SIZES):
        # TODO(synk): scipy.ndimage.gaussian_filter of a delta (reflect
        # boundary) approximated by a window-normalized separable Gaussian.
        taps.append(gaussian_taps_1d(kernel_size, sigma))
    for kernel_size, (sigma_space, _sigma_color) in zip(
        BILATERAL_FILTER_KERNEL_SIZES, BILATERAL_FILTER_SIGMAS
    ):
        # TODO(synk): cv2.bilateralFilter of a delta is not reproducible without
        # OpenCV; separable Gaussian(sigma_space) stand-in (sigma_color ignored).
        taps.append(gaussian_taps_1d(kernel_size, sigma_space))
    return taps


# ----------------------------------------------------------------------------
# Constant reflect-pad + 1-D conv matrices (built at trace time with numpy)
# ----------------------------------------------------------------------------
def _reflect_index(i: int, n: int) -> int:
    """PyTorch ReflectionPad2d / np.pad(mode='reflect') index mapping."""
    if i < 0:
        i = -i
    if i >= n:
        i = 2 * (n - 1) - i
    assert 0 <= i < n
    return i


def reflect_conv_matrix(n: int, taps: np.ndarray) -> np.ndarray:
    """Dense matrix T (n x n) such that (x @ T)[j] = sum_dx taps[dx] * x[reflect(j + dx - pad)].

    Folds ReflectionPad1d + valid 1-D correlation into one matrix so the
    filtering stage runs as an MXU matmul with no padded copy of x.
    """
    ks = len(taps)
    pad = ks // 2
    assert pad <= n - 1, "reflection pad must be smaller than the spatial size"
    T = np.zeros((n, n), np.float32)
    for j in range(n):              # output position
        for dx in range(ks):
            src = _reflect_index(j + dx - pad, n)
            T[src, j] += float(taps[dx])
    return T


# ----------------------------------------------------------------------------
# Pallas kernel
# ----------------------------------------------------------------------------
def make_crf_kernel(n_filters: int, n_classes: int, channels: int):
    F, K, C = n_filters, n_classes, channels

    def kernel(x_ref, unary_ref, tw_ref, th_ref, w3_ref, b3_ref, wc_ref, bc_ref, out_ref):
        # x_ref     : (C, H, W)   VMEM   input image (batch dim squeezed)
        # unary_ref : (K, H, W)   VMEM   unary potentials
        # tw_ref    : (F, W, W)   VMEM   constant row-pass matrices (reflect folded)
        # th_ref    : (F, H, H)   VMEM   constant column-pass matrices
        # w3_ref    : (M,)   SMEM  Conv3d(M,1,1) weight, flattened (M = F*C)
        # b3_ref    : (1,)   SMEM  Conv3d bias
        # wc_ref    : (K*K,) SMEM  Conv2d(K,K,1) weight, row-major [out, in]
        # bc_ref    : (K,)   SMEM  Conv2d bias
        # out_ref   : (K, H, W)   VMEM

        # ---- Q_init = softmax(unary, dim=class), rank-2 planes only ----
        u = [unary_ref[k] for k in range(K)]                 # K x [H, W]
        mx = u[0]
        for k in range(1, K):
            mx = jnp.maximum(mx, u[k])
        ex = [jnp.exp(u[k] - mx) for k in range(K)]
        denom = ex[0]
        for k in range(1, K):
            denom = denom + ex[k]
        inv = pl.reciprocal(denom, approx=False)             # EUP, not VALU divide
        q_init = [ex[k] * inv for k in range(K)]

        # ---- message passing fused with Conv3d(M,1,1) weighting ----
        # S = sum_f T_h[f] @ ((sum_c w3[f*C+c] * x[c]) @ T_w[f])
        # Exact: the fixed filters are linear, so the w3-weighted channel sum
        # commutes with them -> only 2 MXU matmuls per filter (8 total).
        xs = [x_ref[c] for c in range(C)]
        S = None
        for f in range(F):                                   # 4 iterations, bounded live state
            xf = w3_ref[f * C] * xs[0]
            for c in range(1, C):
                xf = xf + w3_ref[f * C + c] * xs[c]
            tmp = jnp.dot(xf, tw_ref[f], preferred_element_type=jnp.float32)   # [H,W]@[W,W]
            col = jnp.dot(th_ref[f], tmp, preferred_element_type=jnp.float32)  # [H,H]@[H,W]
            S = col if S is None else S + col

        # ---- Q_weighted = relu(Q_init * S + b3) ----
        # (w3 does not depend on class index; ReLU applies after the full sum.)
        b3 = b3_ref[0]
        qw = [jnp.maximum(q_init[k] * S + b3, 0.0) for k in range(K)]

        # ---- compatibility transform (Conv2d K->K, 1x1) + residual ----
        # Per-class plane stores: no jnp.stack copy before the writeback.
        for k in range(K):
            acc = wc_ref[k * K] * qw[0]
            for j in range(1, K):
                acc = acc + wc_ref[k * K + j] * qw[j]
            out_ref[k] = u[k] - (acc + bc_ref[k])

    return kernel


# ----------------------------------------------------------------------------
# Wrapper
# ----------------------------------------------------------------------------
def crf_forward_pallas(x, unary, filter_taps, w3, b3, wc, bc):
    """x: [B, C, H, W] f32, unary: [B, K, H, W] f32 -> [B, K, H, W] f32."""
    B, C, H, W = x.shape
    K = unary.shape[1]
    F = len(filter_taps)

    # Constant reflect-pad+conv matrices (trace-time numpy; tiny).
    tw = jnp.asarray(np.stack([reflect_conv_matrix(W, t) for t in filter_taps]))    # (F,W,W)
    th = jnp.asarray(np.stack([reflect_conv_matrix(H, t).T for t in filter_taps]))  # (F,H,H)

    w3 = w3.reshape(-1).astype(jnp.float32)        # [M]
    b3 = b3.reshape(-1).astype(jnp.float32)        # [1]
    wc_flat = wc.reshape(-1).astype(jnp.float32)   # [K*K], row-major [out, in]
    bc = bc.reshape(-1).astype(jnp.float32)        # [K]

    kernel = make_crf_kernel(F, K, C)
    smem_spec = pl.BlockSpec(memory_space=pltpu.MemorySpace.SMEM)

    # Advisory cost estimate: matmul filter stage + pointwise stages.
    conv_flops = F * (C * 2 * H * W + 2 * H * W * W + 2 * H * H * W + H * W)
    post_flops = H * W * (6 * K + 3 * K + 2 * K * K + 2 * K)
    cost = pl.CostEstimate(
        flops=int(B * (conv_flops + post_flops)),
        transcendentals=int(B * K * H * W),
        bytes_accessed=int(4 * (B * (C + 2 * K) * H * W + F * (W * W + H * H))),
    )

    fn = pl.pallas_call(
        kernel,
        out_shape=jax.ShapeDtypeStruct((B, K, H, W), jnp.float32),
        grid=(B,),
        in_specs=[
            pl.BlockSpec((None, C, H, W), lambda b: (b, 0, 0, 0)),  # x (batch squeezed)
            pl.BlockSpec((None, K, H, W), lambda b: (b, 0, 0, 0)),  # unary potentials
            pl.BlockSpec((F, W, W), lambda b: (0, 0, 0)),           # row-pass matrices
            pl.BlockSpec((F, H, H), lambda b: (0, 0, 0)),           # column-pass matrices
            smem_spec,  # w3
            smem_spec,  # b3
            smem_spec,  # wc
            smem_spec,  # bc
        ],
        out_specs=pl.BlockSpec((None, K, H, W), lambda b: (b, 0, 0, 0)),
        # Independent batch elements: sharded across v7x's two TensorCores,
        # no-op on single-TC v5e/v6e.
        compiler_params=pltpu.CompilerParams(dimension_semantics=("parallel",)),
        cost_estimate=cost,
    )
    return fn(x.astype(jnp.float32), unary.astype(jnp.float32), tw, th, w3, b3, wc_flat, bc)


# ----------------------------------------------------------------------------
# Pure-JAX reference (for correctness cross-check)
# ----------------------------------------------------------------------------
def reference_forward(x, unary, filter_taps, w3, b3, wc, bc):
    B, C, H, W = x.shape
    q_init = jax.nn.softmax(unary, axis=1)
    feats = []
    for taps in filter_taps:
        kern = np.outer(taps, taps).astype(np.float32)
        ks = int(kern.shape[0])
        p = ks // 2
        xp = jnp.pad(x, ((0, 0), (0, 0), (p, p), (p, p)), mode="reflect")
        kern4 = jnp.broadcast_to(jnp.asarray(kern)[None, None], (C, 1, ks, ks))
        y = jax.lax.conv_general_dilated(
            xp, kern4, window_strides=(1, 1), padding="VALID",
            dimension_numbers=("NCHW", "OIHW", "NCHW"), feature_group_count=C,
            precision=jax.lax.Precision.HIGHEST,
        )
        feats.append(y)
    x_mp = jnp.concatenate(feats, axis=1)                        # [B, M, H, W]
    q_mp = x_mp[:, :, None] * q_init[:, None]                    # [B, M, K, H, W]
    q_wf = jnp.einsum("bmkhw,m->bkhw", q_mp, w3.reshape(-1),
                      precision=jax.lax.Precision.HIGHEST) + b3.reshape(())
    q_w = jax.nn.relu(q_wf)
    q_comp = jnp.einsum("kj,bjhw->bkhw", wc, q_w,
                        precision=jax.lax.Precision.HIGHEST) + bc[None, :, None, None]
    return unary - q_comp


# ----------------------------------------------------------------------------
# Main
# ----------------------------------------------------------------------------
if __name__ == "__main__":
    B, C, K, H, W = 2, CHANNELS, N_CLASSES, 16, 16

    filter_taps = build_filter_taps()
    M = C * len(filter_taps)  # message_passing_channels_size

    key = jax.random.PRNGKey(0)
    k1, k2, k3, k4, kx, ku = jax.random.split(key, 6)
    # Synthetic parameters (shapes match the nn.Conv3d / nn.Conv2d params).
    w3 = 0.1 * jax.random.normal(k1, (M,), jnp.float32)       # Conv3d(M,1,1) weight
    b3 = 0.1 * jax.random.normal(k2, (1,), jnp.float32)       # Conv3d bias
    wc = 0.1 * jax.random.normal(k3, (K, K), jnp.float32)     # Conv2d(K,K,1) weight
    bc = 0.1 * jax.random.normal(k4, (K,), jnp.float32)       # Conv2d bias

    x = jax.random.normal(kx, (B, C, H, W), jnp.float32)      # input images
    unary = jax.random.normal(ku, (B, K, H, W), jnp.float32)  # unary potentials

    out = crf_forward_pallas(x, unary, filter_taps, w3, b3, wc, bc)
    out = jax.block_until_ready(out)

    ref = reference_forward(x, unary, filter_taps, w3, b3, wc, bc)
    ref = jax.block_until_ready(ref)

    assert out.shape == (B, K, H, W), out.shape
    # Tolerance covers the MXU f32 matmul path (precision of the in-kernel
    # dot is backend-dependent); comfortably tight vs. O(1) outputs.
    np.testing.assert_allclose(np.asarray(out), np.asarray(ref), rtol=5e-3, atol=5e-3)

    print("KERNEL_OK")
</pallas_src>

<mosaic_0001>
module attributes {stable_mosaic.version = 11 : i64} {
  func.func @kernel(%arg0: i32, %arg1: memref<1x3x16x16xf32, #tpu.memory_space<vmem>>, %arg2: memref<1x4x16x16xf32, #tpu.memory_space<vmem>>, %arg3: memref<4x16x16xf32, #tpu.memory_space<vmem>>, %arg4: memref<4x16x16xf32, #tpu.memory_space<vmem>>, %arg5: memref<12xf32, #tpu.memory_space<smem>>, %arg6: memref<1xf32, #tpu.memory_space<smem>>, %arg7: memref<16xf32, #tpu.memory_space<smem>>, %arg8: memref<4xf32, #tpu.memory_space<smem>>, %arg9: memref<1x4x16x16xf32, #tpu.memory_space<vmem>>) attributes {dimension_semantics = [#tpu.dimension_semantics<parallel>], iteration_bounds = array<i64: 2>, scalar_prefetch = 0 : i64, scratch_operands = 0 : i64, tpu.core_type = #tpu.core_type<tc>, window_params = [{transform_indices = @transform_0, window_bounds = array<i64: 1, 3, 16, 16>}, {transform_indices = @transform_1, window_bounds = array<i64: 1, 4, 16, 16>}, {pipeline_mode = #tpu.pipeline_mode<synchronous>, transform_indices = @transform_2, window_bounds = array<i64: 4, 16, 16>}, {pipeline_mode = #tpu.pipeline_mode<synchronous>, transform_indices = @transform_3, window_bounds = array<i64: 4, 16, 16>}, {transform_indices = @transform_4, window_bounds = array<i64: 12>}, {transform_indices = @transform_5, window_bounds = array<i64: 1>}, {transform_indices = @transform_6, window_bounds = array<i64: 16>}, {transform_indices = @transform_7, window_bounds = array<i64: 4>}, {transform_indices = @transform_8, window_bounds = array<i64: 1, 4, 16, 16>}]} {
    %c0 = arith.constant 0 : index
    %c0_0 = arith.constant 0 : index
    %c0_1 = arith.constant 0 : index
    %c0_2 = arith.constant 0 : index
    %0 = vector.load %arg2[%c0, %c0_0, %c0_1, %c0_2] : memref<1x4x16x16xf32, #tpu.memory_space<vmem>>, vector<1x1x16x16xf32>
    %1 = vector.shape_cast %0 : vector<1x1x16x16xf32> to vector<16x16xf32>
    %c0_3 = arith.constant 0 : index
    %c1 = arith.constant 1 : index
    %c0_4 = arith.constant 0 : index
    %c0_5 = arith.constant 0 : index
    %2 = vector.load %arg2[%c0_3, %c1, %c0_4, %c0_5] : memref<1x4x16x16xf32, #tpu.memory_space<vmem>>, vector<1x1x16x16xf32>
    %3 = vector.shape_cast %2 : vector<1x1x16x16xf32> to vector<16x16xf32>
    %c0_6 = arith.constant 0 : index
    %c2 = arith.constant 2 : index
    %c0_7 = arith.constant 0 : index
    %c0_8 = arith.constant 0 : index
    %4 = vector.load %arg2[%c0_6, %c2, %c0_7, %c0_8] : memref<1x4x16x16xf32, #tpu.memory_space<vmem>>, vector<1x1x16x16xf32>
    %5 = vector.shape_cast %4 : vector<1x1x16x16xf32> to vector<16x16xf32>
    %c0_9 = arith.constant 0 : index
    %c3 = arith.constant 3 : index
    %c0_10 = arith.constant 0 : index
    %c0_11 = arith.constant 0 : index
    %6 = vector.load %arg2[%c0_9, %c3, %c0_10, %c0_11] : memref<1x4x16x16xf32, #tpu.memory_space<vmem>>, vector<1x1x16x16xf32>
    %7 = vector.shape_cast %6 : vector<1x1x16x16xf32> to vector<16x16xf32>
    %8 = arith.maximumf %1, %3 : vector<16x16xf32>
    %9 = arith.maximumf %8, %5 : vector<16x16xf32>
    %10 = arith.maximumf %9, %7 : vector<16x16xf32>
    %11 = arith.subf %1, %10 : vector<16x16xf32>
    %12 = math.exp %11 : vector<16x16xf32>
    %13 = arith.subf %3, %10 : vector<16x16xf32>
    %14 = math.exp %13 : vector<16x16xf32>
    %15 = arith.subf %5, %10 : vector<16x16xf32>
    %16 = math.exp %15 : vector<16x16xf32>
    %17 = arith.subf %7, %10 : vector<16x16xf32>
    %18 = math.exp %17 : vector<16x16xf32>
    %19 = arith.addf %12, %14 : vector<16x16xf32>
    %20 = arith.addf %19, %16 : vector<16x16xf32>
    %21 = arith.addf %20, %18 : vector<16x16xf32>
    %22 = tpu.reciprocal %21 : vector<16x16xf32> -> vector<16x16xf32>
    %23 = arith.mulf %12, %22 : vector<16x16xf32>
    %24 = arith.mulf %14, %22 : vector<16x16xf32>
    %25 = arith.mulf %16, %22 : vector<16x16xf32>
    %26 = arith.mulf %18, %22 : vector<16x16xf32>
    %c0_12 = arith.constant 0 : index
    %c0_13 = arith.constant 0 : index
    %c0_14 = arith.constant 0 : index
    %c0_15 = arith.constant 0 : index
    %27 = vector.load %arg1[%c0_12, %c0_13, %c0_14, %c0_15] : memref<1x3x16x16xf32, #tpu.memory_space<vmem>>, vector<1x1x16x16xf32>
    %28 = vector.shape_cast %27 : vector<1x1x16x16xf32> to vector<16x16xf32>
    %c0_16 = arith.constant 0 : index
    %c1_17 = arith.constant 1 : index
    %c0_18 = arith.constant 0 : index
    %c0_19 = arith.constant 0 : index
    %29 = vector.load %arg1[%c0_16, %c1_17, %c0_18, %c0_19] : memref<1x3x16x16xf32, #tpu.memory_space<vmem>>, vector<1x1x16x16xf32>
    %30 = vector.shape_cast %29 : vector<1x1x16x16xf32> to vector<16x16xf32>
    %c0_20 = arith.constant 0 : index
    %c2_21 = arith.constant 2 : index
    %c0_22 = arith.constant 0 : index
    %c0_23 = arith.constant 0 : index
    %31 = vector.load %arg1[%c0_20, %c2_21, %c0_22, %c0_23] : memref<1x3x16x16xf32, #tpu.memory_space<vmem>>, vector<1x1x16x16xf32>
    %32 = vector.shape_cast %31 : vector<1x1x16x16xf32> to vector<16x16xf32>
    %c0_24 = arith.constant 0 : index
    %33 = memref.load %arg5[%c0_24] : memref<12xf32, #tpu.memory_space<smem>>
    %34 = vector.broadcast %33 : f32 to vector<16x16xf32>
    %35 = arith.mulf %34, %28 : vector<16x16xf32>
    %c1_25 = arith.constant 1 : index
    %36 = memref.load %arg5[%c1_25] : memref<12xf32, #tpu.memory_space<smem>>
    %37 = vector.broadcast %36 : f32 to vector<16x16xf32>
    %38 = arith.mulf %37, %30 : vector<16x16xf32>
    %39 = arith.addf %35, %38 : vector<16x16xf32>
    %c2_26 = arith.constant 2 : index
    %40 = memref.load %arg5[%c2_26] : memref<12xf32, #tpu.memory_space<smem>>
    %41 = vector.broadcast %40 : f32 to vector<16x16xf32>
    %42 = arith.mulf %41, %32 : vector<16x16xf32>
    %43 = arith.addf %39, %42 : vector<16x16xf32>
    %c0_27 = arith.constant 0 : index
    %c0_28 = arith.constant 0 : index
    %c0_29 = arith.constant 0 : index
    %44 = vector.load %arg3[%c0_27, %c0_28, %c0_29] : memref<4x16x16xf32, #tpu.memory_space<vmem>>, vector<1x16x16xf32>
    %45 = vector.shape_cast %44 : vector<1x16x16xf32> to vector<16x16xf32>
    %cst = arith.constant dense<0.000000e+00> : vector<16x16xf32>
    %46 = tpu.matmul %43, %45, %cst {dimension_numbers = #tpu.dot_dimension_numbers<[1], [0], [0], [1], [0, 0, 1, 1], [], []>} : vector<16x16xf32>, vector<16x16xf32>, vector<16x16xf32> -> vector<16x16xf32>
    %c0_30 = arith.constant 0 : index
    %c0_31 = arith.constant 0 : index
    %c0_32 = arith.constant 0 : index
    %47 = vector.load %arg4[%c0_30, %c0_31, %c0_32] : memref<4x16x16xf32, #tpu.memory_space<vmem>>, vector<1x16x16xf32>
    %48 = vector.shape_cast %47 : vector<1x16x16xf32> to vector<16x16xf32>
    %cst_33 = arith.constant dense<0.000000e+00> : vector<16x16xf32>
    %49 = tpu.matmul %48, %46, %cst_33 {dimension_numbers = #tpu.dot_dimension_numbers<[1], [0], [0], [1], [0, 0, 1, 1], [], []>} : vector<16x16xf32>, vector<16x16xf32>, vector<16x16xf32> -> vector<16x16xf32>
    %c3_34 = arith.constant 3 : index
    %50 = memref.load %arg5[%c3_34] : memref<12xf32, #tpu.memory_space<smem>>
    %51 = vector.broadcast %50 : f32 to vector<16x16xf32>
    %52 = arith.mulf %51, %28 : vector<16x16xf32>
    %c4 = arith.constant 4 : index
    %53 = memref.load %arg5[%c4] : memref<12xf32, #tpu.memory_space<smem>>
    %54 = vector.broadcast %53 : f32 to vector<16x16xf32>
    %55 = arith.mulf %54, %30 : vector<16x16xf32>
    %56 = arith.addf %52, %55 : vector<16x16xf32>
    %c5 = arith.constant 5 : index
    %57 = memref.load %arg5[%c5] : memref<12xf32, #tpu.memory_space<smem>>
    %58 = vector.broadcast %57 : f32 to vector<16x16xf32>
    %59 = arith.mulf %58, %32 : vector<16x16xf32>
    %60 = arith.addf %56, %59 : vector<16x16xf32>
    %c1_35 = arith.constant 1 : index
    %c0_36 = arith.constant 0 : index
    %c0_37 = arith.constant 0 : index
    %61 = vector.load %arg3[%c1_35, %c0_36, %c0_37] : memref<4x16x16xf32, #tpu.memory_space<vmem>>, vector<1x16x16xf32>
    %62 = vector.shape_cast %61 : vector<1x16x16xf32> to vector<16x16xf32>
    %cst_38 = arith.constant dense<0.000000e+00> : vector<16x16xf32>
    %63 = tpu.matmul %60, %62, %cst_38 {dimension_numbers = #tpu.dot_dimension_numbers<[1], [0], [0], [1], [0, 0, 1, 1], [], []>} : vector<16x16xf32>, vector<16x16xf32>, vector<16x16xf32> -> vector<16x16xf32>
    %c1_39 = arith.constant 1 : index
    %c0_40 = arith.constant 0 : index
    %c0_41 = arith.constant 0 : index
    %64 = vector.load %arg4[%c1_39, %c0_40, %c0_41] : memref<4x16x16xf32, #tpu.memory_space<vmem>>, vector<1x16x16xf32>
    %65 = vector.shape_cast %64 : vector<1x16x16xf32> to vector<16x16xf32>
    %cst_42 = arith.constant dense<0.000000e+00> : vector<16x16xf32>
    %66 = tpu.matmul %65, %63, %cst_42 {dimension_numbers = #tpu.dot_dimension_numbers<[1], [0], [0], [1], [0, 0, 1, 1], [], []>} : vector<16x16xf32>, vector<16x16xf32>, vector<16x16xf32> -> vector<16x16xf32>
    %67 = arith.addf %49, %66 : vector<16x16xf32>
    %c6 = arith.constant 6 : index
    %68 = memref.load %arg5[%c6] : memref<12xf32, #tpu.memory_space<smem>>
    %69 = vector.broadcast %68 : f32 to vector<16x16xf32>
    %70 = arith.mulf %69, %28 : vector<16x16xf32>
    %c7 = arith.constant 7 : index
    %71 = memref.load %arg5[%c7] : memref<12xf32, #tpu.memory_space<smem>>
    %72 = vector.broadcast %71 : f32 to vector<16x16xf32>
    %73 = arith.mulf %72, %30 : vector<16x16xf32>
    %74 = arith.addf %70, %73 : vector<16x16xf32>
    %c8 = arith.constant 8 : index
    %75 = memref.load %arg5[%c8] : memref<12xf32, #tpu.memory_space<smem>>
    %76 = vector.broadcast %75 : f32 to vector<16x16xf32>
    %77 = arith.mulf %76, %32 : vector<16x16xf32>
    %78 = arith.addf %74, %77 : vector<16x16xf32>
    %c2_43 = arith.constant 2 : index
    %c0_44 = arith.constant 0 : index
    %c0_45 = arith.constant 0 : index
    %79 = vector.load %arg3[%c2_43, %c0_44, %c0_45] : memref<4x16x16xf32, #tpu.memory_space<vmem>>, vector<1x16x16xf32>
    %80 = vector.shape_cast %79 : vector<1x16x16xf32> to vector<16x16xf32>
    %cst_46 = arith.constant dense<0.000000e+00> : vector<16x16xf32>
    %81 = tpu.matmul %78, %80, %cst_46 {dimension_numbers = #tpu.dot_dimension_numbers<[1], [0], [0], [1], [0, 0, 1, 1], [], []>} : vector<16x16xf32>, vector<16x16xf32>, vector<16x16xf32> -> vector<16x16xf32>
    %c2_47 = arith.constant 2 : index
    %c0_48 = arith.constant 0 : index
    %c0_49 = arith.constant 0 : index
    %82 = vector.load %arg4[%c2_47, %c0_48, %c0_49] : memref<4x16x16xf32, #tpu.memory_space<vmem>>, vector<1x16x16xf32>
    %83 = vector.shape_cast %82 : vector<1x16x16xf32> to vector<16x16xf32>
    %cst_50 = arith.constant dense<0.000000e+00> : vector<16x16xf32>
    %84 = tpu.matmul %83, %81, %cst_50 {dimension_numbers = #tpu.dot_dimension_numbers<[1], [0], [0], [1], [0, 0, 1, 1], [], []>} : vector<16x16xf32>, vector<16x16xf32>, vector<16x16xf32> -> vector<16x16xf32>
    %85 = arith.addf %67, %84 : vector<16x16xf32>
    %c9 = arith.constant 9 : index
    %86 = memref.load %arg5[%c9] : memref<12xf32, #tpu.memory_space<smem>>
    %87 = vector.broadcast %86 : f32 to vector<16x16xf32>
    %88 = arith.mulf %87, %28 : vector<16x16xf32>
    %c10 = arith.constant 10 : index
    %89 = memref.load %arg5[%c10] : memref<12xf32, #tpu.memory_space<smem>>
    %90 = vector.broadcast %89 : f32 to vector<16x16xf32>
    %91 = arith.mulf %90, %30 : vector<16x16xf32>
    %92 = arith.addf %88, %91 : vector<16x16xf32>
    %c11 = arith.constant 11 : index
    %93 = memref.load %arg5[%c11] : memref<12xf32, #tpu.memory_space<smem>>
    %94 = vector.broadcast %93 : f32 to vector<16x16xf32>
    %95 = arith.mulf %94, %32 : vector<16x16xf32>
    %96 = arith.addf %92, %95 : vector<16x16xf32>
    %c3_51 = arith.constant 3 : index
    %c0_52 = arith.constant 0 : index
    %c0_53 = arith.constant 0 : index
    %97 = vector.load %arg3[%c3_51, %c0_52, %c0_53] : memref<4x16x16xf32, #tpu.memory_space<vmem>>, vector<1x16x16xf32>
    %98 = vector.shape_cast %97 : vector<1x16x16xf32> to vector<16x16xf32>
    %cst_54 = arith.constant dense<0.000000e+00> : vector<16x16xf32>
    %99 = tpu.matmul %96, %98, %cst_54 {dimension_numbers = #tpu.dot_dimension_numbers<[1], [0], [0], [1], [0, 0, 1, 1], [], []>} : vector<16x16xf32>, vector<16x16xf32>, vector<16x16xf32> -> vector<16x16xf32>
    %c3_55 = arith.constant 3 : index
    %c0_56 = arith.constant 0 : index
    %c0_57 = arith.constant 0 : index
    %100 = vector.load %arg4[%c3_55, %c0_56, %c0_57] : memref<4x16x16xf32, #tpu.memory_space<vmem>>, vector<1x16x16xf32>
    %101 = vector.shape_cast %100 : vector<1x16x16xf32> to vector<16x16xf32>
    %cst_58 = arith.constant dense<0.000000e+00> : vector<16x16xf32>
    %102 = tpu.matmul %101, %99, %cst_58 {dimension_numbers = #tpu.dot_dimension_numbers<[1], [0], [0], [1], [0, 0, 1, 1], [], []>} : vector<16x16xf32>, vector<16x16xf32>, vector<16x16xf32> -> vector<16x16xf32>
    %103 = arith.addf %85, %102 : vector<16x16xf32>
    %c0_59 = arith.constant 0 : index
    %104 = memref.load %arg6[%c0_59] : memref<1xf32, #tpu.memory_space<smem>>
    %105 = arith.mulf %23, %103 : vector<16x16xf32>
    %106 = vector.broadcast %104 : f32 to vector<16x16xf32>
    %107 = arith.addf %105, %106 : vector<16x16xf32>
    %cst_60 = arith.constant 0.000000e+00 : f32
    %108 = vector.broadcast %cst_60 : f32 to vector<16x16xf32>
    %109 = arith.maximumf %107, %108 : vector<16x16xf32>
    %110 = arith.mulf %24, %103 : vector<16x16xf32>
    %111 = vector.broadcast %104 : f32 to vector<16x16xf32>
    %112 = arith.addf %110, %111 : vector<16x16xf32>
    %cst_61 = arith.constant 0.000000e+00 : f32
    %113 = vector.broadcast %cst_61 : f32 to vector<16x16xf32>
    %114 = arith.maximumf %112, %113 : vector<16x16xf32>
    %115 = arith.mulf %25, %103 : vector<16x16xf32>
    %116 = vector.broadcast %104 : f32 to vector<16x16xf32>
    %117 = arith.addf %115, %116 : vector<16x16xf32>
    %cst_62 = arith.constant 0.000000e+00 : f32
    %118 = vector.broadcast %cst_62 : f32 to vector<16x16xf32>
    %119 = arith.maximumf %117, %118 : vector<16x16xf32>
    %120 = arith.mulf %26, %103 : vector<16x16xf32>
    %121 = vector.broadcast %104 : f32 to vector<16x16xf32>
    %122 = arith.addf %120, %121 : vector<16x16xf32>
    %cst_63 = arith.constant 0.000000e+00 : f32
    %123 = vector.broadcast %cst_63 : f32 to vector<16x16xf32>
    %124 = arith.maximumf %122, %123 : vector<16x16xf32>
    %c0_64 = arith.constant 0 : index
    %125 = memref.load %arg7[%c0_64] : memref<16xf32, #tpu.memory_space<smem>>
    %126 = vector.broadcast %125 : f32 to vector<16x16xf32>
    %127 = arith.mulf %126, %109 : vector<16x16xf32>
    %c1_65 = arith.constant 1 : index
    %128 = memref.load %arg7[%c1_65] : memref<16xf32, #tpu.memory_space<smem>>
    %129 = vector.broadcast %128 : f32 to vector<16x16xf32>
    %130 = arith.mulf %129, %114 : vector<16x16xf32>
    %131 = arith.addf %127, %130 : vector<16x16xf32>
    %c2_66 = arith.constant 2 : index
    %132 = memref.load %arg7[%c2_66] : memref<16xf32, #tpu.memory_space<smem>>
    %133 = vector.broadcast %132 : f32 to vector<16x16xf32>
    %134 = arith.mulf %133, %119 : vector<16x16xf32>
    %135 = arith.addf %131, %134 : vector<16x16xf32>
    %c3_67 = arith.constant 3 : index
    %136 = memref.load %arg7[%c3_67] : memref<16xf32, #tpu.memory_space<smem>>
    %137 = vector.broadcast %136 : f32 to vector<16x16xf32>
    %138 = arith.mulf %137, %124 : vector<16x16xf32>
    %139 = arith.addf %135, %138 : vector<16x16xf32>
    %c0_68 = arith.constant 0 : index
    %140 = memref.load %arg8[%c0_68] : memref<4xf32, #tpu.memory_space<smem>>
    %141 = vector.broadcast %140 : f32 to vector<16x16xf32>
    %142 = arith.addf %139, %141 : vector<16x16xf32>
    %143 = arith.subf %1, %142 : vector<16x16xf32>
    %c0_69 = arith.constant 0 : index
    %c0_70 = arith.constant 0 : index
    %c0_71 = arith.constant 0 : index
    %c0_72 = arith.constant 0 : index
    %144 = vector.load %arg9[%c0_69, %c0_70, %c0_71, %c0_72] : memref<1x4x16x16xf32, #tpu.memory_space<vmem>>, vector<1x1x16x16xf32>
    %145 = vector.shape_cast %144 : vector<1x1x16x16xf32> to vector<16x16xf32>
    %146 = vector.shape_cast %143 : vector<16x16xf32> to vector<1x1x16x16xf32>
    tpu.vector_store %arg9[%c0_69, %c0_70, %c0_71, %c0_72], %146 {strides = array<i32>} : memref<1x4x16x16xf32, #tpu.memory_space<vmem>>, vector<1x1x16x16xf32>,
    %c4_73 = arith.constant 4 : index
    %147 = memref.load %arg7[%c4_73] : memref<16xf32, #tpu.memory_space<smem>>
    %148 = vector.broadcast %147 : f32 to vector<16x16xf32>
    %149 = arith.mulf %148, %109 : vector<16x16xf32>
    %c5_74 = arith.constant 5 : index
    %150 = memref.load %arg7[%c5_74] : memref<16xf32, #tpu.memory_space<smem>>
    %151 = vector.broadcast %150 : f32 to vector<16x16xf32>
    %152 = arith.mulf %151, %114 : vector<16x16xf32>
    %153 = arith.addf %149, %152 : vector<16x16xf32>
    %c6_75 = arith.constant 6 : index
    %154 = memref.load %arg7[%c6_75] : memref<16xf32, #tpu.memory_space<smem>>
    %155 = vector.broadcast %154 : f32 to vector<16x16xf32>
    %156 = arith.mulf %155, %119 : vector<16x16xf32>
    %157 = arith.addf %153, %156 : vector<16x16xf32>
    %c7_76 = arith.constant 7 : index
    %158 = memref.load %arg7[%c7_76] : memref<16xf32, #tpu.memory_space<smem>>
    %159 = vector.broadcast %158 : f32 to vector<16x16xf32>
    %160 = arith.mulf %159, %124 : vector<16x16xf32>
    %161 = arith.addf %157, %160 : vector<16x16xf32>
    %c1_77 = arith.constant 1 : index
    %162 = memref.load %arg8[%c1_77] : memref<4xf32, #tpu.memory_space<smem>>
    %163 = vector.broadcast %162 : f32 to vector<16x16xf32>
    %164 = arith.addf %161, %163 : vector<16x16xf32>
    %165 = arith.subf %3, %164 : vector<16x16xf32>
    %c0_78 = arith.constant 0 : index
    %c1_79 = arith.constant 1 : index
    %c0_80 = arith.constant 0 : index
    %c0_81 = arith.constant 0 : index
    %166 = vector.load %arg9[%c0_78, %c1_79, %c0_80, %c0_81] : memref<1x4x16x16xf32, #tpu.memory_space<vmem>>, vector<1x1x16x16xf32>
    %167 = vector.shape_cast %166 : vector<1x1x16x16xf32> to vector<16x16xf32>
    %168 = vector.shape_cast %165 : vector<16x16xf32> to vector<1x1x16x16xf32>
    tpu.vector_store %arg9[%c0_78, %c1_79, %c0_80, %c0_81], %168 {strides = array<i32>} : memref<1x4x16x16xf32, #tpu.memory_space<vmem>>, vector<1x1x16x16xf32>,
    %c8_82 = arith.constant 8 : index
    %169 = memref.load %arg7[%c8_82] : memref<16xf32, #tpu.memory_space<smem>>
    %170 = vector.broadcast %169 : f32 to vector<16x16xf32>
    %171 = arith.mulf %170, %109 : vector<16x16xf32>
    %c9_83 = arith.constant 9 : index
    %172 = memref.load %arg7[%c9_83] : memref<16xf32, #tpu.memory_space<smem>>
    %173 = vector.broadcast %172 : f32 to vector<16x16xf32>
    %174 = arith.mulf %173, %114 : vector<16x16xf32>
    %175 = arith.addf %171, %174 : vector<16x16xf32>
    %c10_84 = arith.constant 10 : index
    %176 = memref.load %arg7[%c10_84] : memref<16xf32, #tpu.memory_space<smem>>
    %177 = vector.broadcast %176 : f32 to vector<16x16xf32>
    %178 = arith.mulf %177, %119 : vector<16x16xf32>
    %179 = arith.addf %175, %178 : vector<16x16xf32>
    %c11_85 = arith.constant 11 : index
    %180 = memref.load %arg7[%c11_85] : memref<16xf32, #tpu.memory_space<smem>>
    %181 = vector.broadcast %180 : f32 to vector<16x16xf32>
    %182 = arith.mulf %181, %124 : vector<16x16xf32>
    %183 = arith.addf %179, %182 : vector<16x16xf32>
    %c2_86 = arith.constant 2 : index
    %184 = memref.load %arg8[%c2_86] : memref<4xf32, #tpu.memory_space<smem>>
    %185 = vector.broadcast %184 : f32 to vector<16x16xf32>
    %186 = arith.addf %183, %185 : vector<16x16xf32>
    %187 = arith.subf %5, %186 : vector<16x16xf32>
    %c0_87 = arith.constant 0 : index
    %c2_88 = arith.constant 2 : index
    %c0_89 = arith.constant 0 : index
    %c0_90 = arith.constant 0 : index
    %188 = vector.load %arg9[%c0_87, %c2_88, %c0_89, %c0_90] : memref<1x4x16x16xf32, #tpu.memory_space<vmem>>, vector<1x1x16x16xf32>
    %189 = vector.shape_cast %188 : vector<1x1x16x16xf32> to vector<16x16xf32>
    %190 = vector.shape_cast %187 : vector<16x16xf32> to vector<1x1x16x16xf32>
    tpu.vector_store %arg9[%c0_87, %c2_88, %c0_89, %c0_90], %190 {strides = array<i32>} : memref<1x4x16x16xf32, #tpu.memory_space<vmem>>, vector<1x1x16x16xf32>,
    %c12 = arith.constant 12 : index
    %191 = memref.load %arg7[%c12] : memref<16xf32, #tpu.memory_space<smem>>
    %192 = vector.broadcast %191 : f32 to vector<16x16xf32>
    %193 = arith.mulf %192, %109 : vector<16x16xf32>
    %c13 = arith.constant 13 : index
    %194 = memref.load %arg7[%c13] : memref<16xf32, #tpu.memory_space<smem>>
    %195 = vector.broadcast %194 : f32 to vector<16x16xf32>
    %196 = arith.mulf %195, %114 : vector<16x16xf32>
    %197 = arith.addf %193, %196 : vector<16x16xf32>
    %c14 = arith.constant 14 : index
    %198 = memref.load %arg7[%c14] : memref<16xf32, #tpu.memory_space<smem>>
    %199 = vector.broadcast %198 : f32 to vector<16x16xf32>
    %200 = arith.mulf %199, %119 : vector<16x16xf32>
    %201 = arith.addf %197, %200 : vector<16x16xf32>
    %c15 = arith.constant 15 : index
    %202 = memref.load %arg7[%c15] : memref<16xf32, #tpu.memory_space<smem>>
    %203 = vector.broadcast %202 : f32 to vector<16x16xf32>
    %204 = arith.mulf %203, %124 : vector<16x16xf32>
    %205 = arith.addf %201, %204 : vector<16x16xf32>
    %c3_91 = arith.constant 3 : index
    %206 = memref.load %arg8[%c3_91] : memref<4xf32, #tpu.memory_space<smem>>
    %207 = vector.broadcast %206 : f32 to vector<16x16xf32>
    %208 = arith.addf %205, %207 : vector<16x16xf32>
    %209 = arith.subf %7, %208 : vector<16x16xf32>
    %c0_92 = arith.constant 0 : index
    %c3_93 = arith.constant 3 : index
    %c0_94 = arith.constant 0 : index
    %c0_95 = arith.constant 0 : index
    %210 = vector.load %arg9[%c0_92, %c3_93, %c0_94, %c0_95] : memref<1x4x16x16xf32, #tpu.memory_space<vmem>>, vector<1x1x16x16xf32>
    %211 = vector.shape_cast %210 : vector<1x1x16x16xf32> to vector<16x16xf32>
    %212 = vector.shape_cast %209 : vector<16x16xf32> to vector<1x1x16x16xf32>
    tpu.vector_store %arg9[%c0_92, %c3_93, %c0_94, %c0_95], %212 {strides = array<i32>} : memref<1x4x16x16xf32, #tpu.memory_space<vmem>>, vector<1x1x16x16xf32>,
    return
  }
  func.func @transform_0(%arg0: i32) -> (i32, i32, i32, i32) {
    %c0_i32 = arith.constant 0 : i32
    %c0_i32_0 = arith.constant 0 : i32
    %c0_i32_1 = arith.constant 0 : i32
    %c0_i32_2 = arith.constant 0 : i32
    return %arg0, %c0_i32, %c0_i32_0, %c0_i32_1 : i32, i32, i32, i32
  }
  func.func @transform_1(%arg0: i32) -> (i32, i32, i32, i32) {
    %c0_i32 = arith.constant 0 : i32
    %c0_i32_0 = arith.constant 0 : i32
    %c0_i32_1 = arith.constant 0 : i32
    %c0_i32_2 = arith.constant 0 : i32
    return %arg0, %c0_i32, %c0_i32_0, %c0_i32_1 : i32, i32, i32, i32
  }
  func.func @transform_2(%arg0: i32) -> (i32, i32, i32) {
    %c0_i32 = arith.constant 0 : i32
    %c0_i32_0 = arith.constant 0 : i32
    %c0_i32_1 = arith.constant 0 : i32
    %c0_i32_2 = arith.constant 0 : i32
    return %c0_i32, %c0_i32_0, %c0_i32_1 : i32, i32, i32
  }
  func.func @transform_3(%arg0: i32) -> (i32, i32, i32) {
    %c0_i32 = arith.constant 0 : i32
    %c0_i32_0 = arith.constant 0 : i32
    %c0_i32_1 = arith.constant 0 : i32
    %c0_i32_2 = arith.constant 0 : i32
    return %c0_i32, %c0_i32_0, %c0_i32_1 : i32, i32, i32
  }
  func.func @transform_4(%arg0: i32) -> i32 {
    %c0_i32 = arith.constant 0 : i32
    %c0_i32_0 = arith.constant 0 : i32
    return %c0_i32 : i32
  }
  func.func @transform_5(%arg0: i32) -> i32 {
    %c0_i32 = arith.constant 0 : i32
    %c0_i32_0 = arith.constant 0 : i32
    return %c0_i32 : i32
  }
  func.func @transform_6(%arg0: i32) -> i32 {
    %c0_i32 = arith.constant 0 : i32
    %c0_i32_0 = arith.constant 0 : i32
    return %c0_i32 : i32
  }
  func.func @transform_7(%arg0: i32) -> i32 {
    %c0_i32 = arith.constant 0 : i32
    %c0_i32_0 = arith.constant 0 : i32
    return %c0_i32 : i32
  }
  func.func @transform_8(%arg0: i32) -> (i32, i32, i32, i32) {
    %c0_i32 = arith.constant 0 : i32
    %c0_i32_0 = arith.constant 0 : i32
    %c0_i32_1 = arith.constant 0 : i32
    %c0_i32_2 = arith.constant 0 : i32
    return %arg0, %c0_i32, %c0_i32_0, %c0_i32_1 : i32, i32, i32, i32
  }
}

</mosaic_0001>

<llo_original>
// kernel: tpu_custom_call.1
$region0: #{tpu_custom_call.1}
  #allocation0 [shape = 'u32[]', space=smem, size = 0x4, offset = 0x4, fixed_abs, tag = 'smem constant byte address 0x4 - core index']
  #allocation1 [shape = 'u32[144,128]{1,0:T(1,128)}', space=vmem, size = 0x12000, scoped, tag = 'internal scratch']
  #allocation2 [shape = 'f32[1]{0:T(128)S(6)}', space=smem, size = 0x200, scoped, tag = 'scoped memory for tpu_custom_call.1']
  %s0 = inlined_call_operand.hbm [shape: f32[2,3,16,16], index: 0, kind: input, shape index: {}]
  %s1 = inlined_call_operand.hbm [shape: f32[2,4,16,16], index: 1, kind: input, shape index: {}]
  %s2 = inlined_call_operand.hbm [shape: f32[4,16,16], index: 2, kind: input, shape index: {}]
  %s3 = inlined_call_operand.hbm [shape: f32[4,16,16], index: 3, kind: input, shape index: {}]
  %s4 = inlined_call_operand.vmem [shape: f32[12], index: 4, kind: input, shape index: {}]
  %s5 = inlined_call_operand.<no memory space> [shape: f32[1], index: 5, kind: input, shape index: {}]
  %s6 = inlined_call_operand.vmem [shape: f32[16], index: 6, kind: input, shape index: {}]
  %s7 = inlined_call_operand.vmem [shape: f32[4], index: 7, kind: input, shape index: {}]
  %s8 = inlined_call_operand.hbm [shape: f32[2,4,16,16], index: 8, kind: output, shape index: {}]
  %s9 = sld [smem:[#allocation0]]
  $region93: #{tpu_custom_call.1} parent=0
    _
  %s11 = ssub.s32 1, %s9
  %s12 = scalar_select 0, %s11, %s9
  %13 = sst [smem:[#allocation2]] %s5
  $region1: #{tpu_custom_call.1} parent=0
    #allocation3 [shape = 'u8[49152]{0}', space=vmem, size = 0xc000, scoped, tag = 'input window, operand 0']
    #allocation4 [shape = 's32[2]{0}', space=sflag, size = 0x8, scoped, tag = 'scoped memory for tpu_custom_call.1']
    #allocation5 [shape = 's32[2]{0}', space=sflag, size = 0x8, scoped, tag = 'scoped memory for tpu_custom_call.1']
    #allocation6 [shape = 's32[2]{0}', space=sflag, size = 0x8, scoped, tag = 'scoped memory for tpu_custom_call.1']
    #allocation7 [shape = 'u8[65536]{0}', space=vmem, size = 0x10000, scoped, tag = 'input window, operand 1']
    #allocation8 [shape = 's32[2]{0}', space=sflag, size = 0x8, scoped, tag = 'scoped memory for tpu_custom_call.1']
    #allocation9 [shape = 'u8[32768]{0}', space=vmem, size = 0x8000, scoped, tag = 'input window, operand 2, single buffered']
    #allocation10 [shape = 'u8[32768]{0}', space=vmem, size = 0x8000, scoped, tag = 'input window, operand 3, single buffered']
    #allocation11 [shape = 's32[1]{0}', space=sflag, size = 0x4, scoped, tag = 'scoped memory for tpu_custom_call.1']
    #allocation12 [shape = 'u8[512]{0}', space=smem, size = 0x200, scoped, tag = 'input window, operand 4, single buffered']
    #allocation13 [shape = 'u8[512]{0}', space=smem, size = 0x200, scoped, tag = 'input window, operand 6, single buffered']
    #allocation14 [shape = 's32[1]{0}', space=sflag, size = 0x4, scoped, tag = 'scoped memory for tpu_custom_call.1']
    #allocation15 [shape = 'u8[512]{0}', space=smem, size = 0x200, scoped, tag = 'input window, operand 7, single buffered']
    #allocation16 [shape = 'u8[65536]{0}', space=vmem, size = 0x10000, scoped, tag = 'output window, operand 0']
    %14 = vsyncpa [#allocation4], 0
    %s15 = scalar_lea.sflag [#allocation4], 1
    %16 = vsyncpa %s15, 0
    %17 = vsyncpa [#allocation8], 0
    %s18 = scalar_lea.sflag [#allocation8], 1
    %19 = vsyncpa %s18, 0
    %20 = vsyncpa [#allocation11], 0
    %21 = vsyncpa [#allocation6], 0
    %22 = vsyncpa [#allocation14], 0
    %23 = vsyncpa [#allocation5], 0
    %s24 = scalar_lea.sflag [#allocation5], 1
    %25 = vsyncpa %s24, 0
    loop: start=0, step=1, limit=4
    $region2: #{tpu_custom_call.1} parent=1 // loop_pre_header
      _
    $region3: #{tpu_custom_call.1} parent=1 // loop_header
      %s27 = sphi 0, %s31
      %p28 = scmp.ge.s32.totalorder %s27, 4
      %s37 = sphi 0, %s39
      %s40 = sphi 0, %s37
      %s41 = sphi 0, %s40
      %s57 = sphi 0, %s41
      %s63 = sphi 0, %s65
      %s66 = sphi 0, %s63
      %s67 = sphi 0, %s66
      %s83 = sphi 0, %s67
      %s87 = sphi 0, %s87
      %s89 = sphi 0, %s87
      %s90 = sphi 0, %s89
      %s104 = sphi 0, %s90
      %s108 = sphi 0, %s108
      %s110 = sphi 0, %s108
      %s111 = sphi 0, %s110
      %s125 = sphi 0, %s111
      %s129 = sphi 0, %s129
      %s131 = sphi 0, %s129
      %s132 = sphi 0, %s131
      %s146 = sphi 0, %s132
      %s150 = sphi 0, %s150
      %s152 = sphi 0, %s150
      %s153 = sphi 0, %s152
      %s167 = sphi 0, %s153
      %s171 = sphi 0, %s171
      %s173 = sphi 0, %s171
      %s174 = sphi 0, %s173
      %s188 = sphi 0, %s174
      %s192 = sphi 0, %s192
      %s194 = sphi 0, %s192
      %s195 = sphi 0, %s194
      %s209 = sphi 0, %s195
      %s215 = sphi 0, %s217
      %s218 = sphi 0, %s215
      %s219 = sphi 0, %s218
      %s235 = sphi 0, %s219
    $region4: #{tpu_custom_call.1} parent=1 // loop_header_branch
      %30 = sbr.rel (%p28) target = $region8
    $region5: #{tpu_custom_call.1} parent=1 // loop_body
      %s32 = ssub.s32 %s27, 1
      %s33 = ssub.s32 %s27, 2
      %s34 = sadd.s32 %s27, 1
      %s35 = ssub.s32 %s27, %s34
      %p36 = scmp.eq.s32.totalorder %s35, 0
      %s38 = sadd.s32 %s37, 1
      %s39 = scalar_select %p36, %s37, %s38
      %p42 = pneg %p36
      %p43 = scmp.eq.s32.totalorder %s27, 1
      %p44 = por %p42, %p43
      %p45 = scmp.ne.s32.totalorder %s37, %s40
      %p46 = scmp.eq.s32.totalorder %s27, 0
      %p47 = por %p45, %p46
      %p48 = scmp.ne.s32.totalorder %s37, %s40
      %p49 = scmp.eq.s32.totalorder %s32, 1
      %p50 = por %p48, %p49
      %p51 = scmp.ne.s32.totalorder %s40, %s41
      %p52 = scmp.eq.s32.totalorder %s32, 0
      %p53 = por %p51, %p52
      %p54 = scmp.ne.s32.totalorder %s40, %s41
      %p55 = scmp.eq.s32.totalorder %s33, 1
      %p56 = por %p54, %p55
      %p58 = scmp.ne.s32.totalorder %s41, %s57
      %p59 = scmp.eq.s32.totalorder %s33, 0
      %p60 = por %p58, %p59
      %s61 = ssub.s32 %s27, %s34
      %p62 = scmp.eq.s32.totalorder %s61, 0
      %s64 = sadd.s32 %s63, 1
      %s65 = scalar_select %p62, %s63, %s64
      %p68 = pneg %p62
      %p69 = scmp.eq.s32.totalorder %s27, 1
      %p70 = por %p68, %p69
      %p71 = scmp.ne.s32.totalorder %s63, %s66
      %p72 = scmp.eq.s32.totalorder %s27, 0
      %p73 = por %p71, %p72
      %p74 = scmp.ne.s32.totalorder %s63, %s66
      %p75 = scmp.eq.s32.totalorder %s32, 1
      %p76 = por %p74, %p75
      %p77 = scmp.ne.s32.totalorder %s66, %s67
      %p78 = scmp.eq.s32.totalorder %s32, 0
      %p79 = por %p77, %p78
      %p80 = scmp.ne.s32.totalorder %s66, %s67
      %p81 = scmp.eq.s32.totalorder %s33, 1
      %p82 = por %p80, %p81
      %p84 = scmp.ne.s32.totalorder %s67, %s83
      %p85 = scmp.eq.s32.totalorder %s33, 0
      %p86 = por %p84, %p85
      %s88 = sadd.s32 %s87, 1
      %p91 = scmp.eq.s32.totalorder %s27, 1
      %p92 = scmp.ne.s32.totalorder %s87, %s89
      %p93 = scmp.eq.s32.totalorder %s27, 0
      %p94 = por %p92, %p93
      %p95 = scmp.ne.s32.totalorder %s87, %s89
      %p96 = scmp.eq.s32.totalorder %s32, 1
      %p97 = por %p95, %p96
      %p98 = scmp.ne.s32.totalorder %s89, %s90
      %p99 = scmp.eq.s32.totalorder %s32, 0
      %p100 = por %p98, %p99
      %p101 = scmp.ne.s32.totalorder %s89, %s90
      %p102 = scmp.eq.s32.totalorder %s33, 1
      %p103 = por %p101, %p102
      %p105 = scmp.ne.s32.totalorder %s90, %s104
      %p106 = scmp.eq.s32.totalorder %s33, 0
      %p107 = por %p105, %p106
      %s109 = sadd.s32 %s108, 1
      %p112 = scmp.eq.s32.totalorder %s27, 1
      %p113 = scmp.ne.s32.totalorder %s108, %s110
      %p114 = scmp.eq.s32.totalorder %s27, 0
      %p115 = por %p113, %p114
      %p116 = scmp.ne.s32.totalorder %s108, %s110
      %p117 = scmp.eq.s32.totalorder %s32, 1
      %p118 = por %p116, %p117
      %p119 = scmp.ne.s32.totalorder %s110, %s111
      %p120 = scmp.eq.s32.totalorder %s32, 0
      %p121 = por %p119, %p120
      %p122 = scmp.ne.s32.totalorder %s110, %s111
      %p123 = scmp.eq.s32.totalorder %s33, 1
      %p124 = por %p122, %p123
      %p126 = scmp.ne.s32.totalorder %s111, %s125
      %p127 = scmp.eq.s32.totalorder %s33, 0
      %p128 = por %p126, %p127
      %s130 = sadd.s32 %s129, 1
      %p133 = scmp.eq.s32.totalorder %s27, 1
      %p134 = scmp.ne.s32.totalorder %s129, %s131
      %p135 = scmp.eq.s32.totalorder %s27, 0
      %p136 = por %p134, %p135
      %p137 = scmp.ne.s32.totalorder %s129, %s131
      %p138 = scmp.eq.s32.totalorder %s32, 1
      %p139 = por %p137, %p138
      %p140 = scmp.ne.s32.totalorder %s131, %s132
      %p141 = scmp.eq.s32.totalorder %s32, 0
      %p142 = por %p140, %p141
      %p143 = scmp.ne.s32.totalorder %s131, %s132
      %p144 = scmp.eq.s32.totalorder %s33, 1
      %p145 = por %p143, %p144
      %p147 = scmp.ne.s32.totalorder %s132, %s146
      %p148 = scmp.eq.s32.totalorder %s33, 0
      %p149 = por %p147, %p148
      %s151 = sadd.s32 %s150, 1
      %p154 = scmp.eq.s32.totalorder %s27, 1
      %p155 = scmp.ne.s32.totalorder %s150, %s152
      %p156 = scmp.eq.s32.totalorder %s27, 0
      %p157 = por %p155, %p156
      %p158 = scmp.ne.s32.totalorder %s150, %s152
      %p159 = scmp.eq.s32.totalorder %s32, 1
      %p160 = por %p158, %p159
      %p161 = scmp.ne.s32.totalorder %s152, %s153
      %p162 = scmp.eq.s32.totalorder %s32, 0
      %p163 = por %p161, %p162
      %p164 = scmp.ne.s32.totalorder %s152, %s153
      %p165 = scmp.eq.s32.totalorder %s33, 1
      %p166 = por %p164, %p165
      %p168 = scmp.ne.s32.totalorder %s153, %s167
      %p169 = scmp.eq.s32.totalorder %s33, 0
      %p170 = por %p168, %p169
      %s172 = sadd.s32 %s171, 1
      %p175 = scmp.eq.s32.totalorder %s27, 1
      %p176 = scmp.ne.s32.totalorder %s171, %s173
      %p177 = scmp.eq.s32.totalorder %s27, 0
      %p178 = por %p176, %p177
      %p179 = scmp.ne.s32.totalorder %s171, %s173
      %p180 = scmp.eq.s32.totalorder %s32, 1
      %p181 = por %p179, %p180
      %p182 = scmp.ne.s32.totalorder %s173, %s174
      %p183 = scmp.eq.s32.totalorder %s32, 0
      %p184 = por %p182, %p183
      %p185 = scmp.ne.s32.totalorder %s173, %s174
      %p186 = scmp.eq.s32.totalorder %s33, 1
      %p187 = por %p185, %p186
      %p189 = scmp.ne.s32.totalorder %s174, %s188
      %p190 = scmp.eq.s32.totalorder %s33, 0
      %p191 = por %p189, %p190
      %s193 = sadd.s32 %s192, 1
      %p196 = scmp.eq.s32.totalorder %s27, 1
      %p197 = scmp.ne.s32.totalorder %s192, %s194
      %p198 = scmp.eq.s32.totalorder %s27, 0
      %p199 = por %p197, %p198
      %p200 = scmp.ne.s32.totalorder %s192, %s194
      %p201 = scmp.eq.s32.totalorder %s32, 1
      %p202 = por %p200, %p201
      %p203 = scmp.ne.s32.totalorder %s194, %s195
      %p204 = scmp.eq.s32.totalorder %s32, 0
      %p205 = por %p203, %p204
      %p206 = scmp.ne.s32.totalorder %s194, %s195
      %p207 = scmp.eq.s32.totalorder %s33, 1
      %p208 = por %p206, %p207
      %p210 = scmp.ne.s32.totalorder %s195, %s209
      %p211 = scmp.eq.s32.totalorder %s33, 0
      %p212 = por %p210, %p211
      %s213 = ssub.s32 %s27, %s34
      %p214 = scmp.eq.s32.totalorder %s213, 0
      %s216 = sadd.s32 %s215, 1
      %s217 = scalar_select %p214, %s215, %s216
      %p220 = pneg %p214
      %p221 = scmp.eq.s32.totalorder %s27, 1
      %p222 = por %p220, %p221
      %p223 = scmp.ne.s32.totalorder %s215, %s218
      %p224 = scmp.eq.s32.totalorder %s27, 0
      %p225 = por %p223, %p224
      %p226 = scmp.ne.s32.totalorder %s215, %s218
      %p227 = scmp.eq.s32.totalorder %s32, 1
      %p228 = por %p226, %p227
      %p229 = scmp.ne.s32.totalorder %s218, %s219
      %p230 = scmp.eq.s32.totalorder %s32, 0
      %p231 = por %p229, %p230
      %p232 = scmp.ne.s32.totalorder %s218, %s219
      %p233 = scmp.eq.s32.totalorder %s33, 1
      %p234 = por %p232, %p233
      %p236 = scmp.ne.s32.totalorder %s219, %s235
      %p237 = scmp.eq.s32.totalorder %s33, 0
      %p238 = por %p236, %p237
      %p239 = scmp.le.s32.totalorder 1, %s27
      %p240 = scmp.lt.s32.totalorder %s27, 3
      %p241 = pnand %p239, %p240
      %p242 = pneg %p241
      // Predicated region
      $region9: #{tpu_custom_call.1} parent=5 // pred_check
        _
      $region10: #{tpu_custom_call.1} parent=5 // pred_check_branch
        %244 = sbr.rel (%p241) target = $region12
      $region11: #{tpu_custom_call.1} parent=5 // pred_region
        %s245 = ssub.s32 %s27, 1
        // Predicated region
        $region13: #{tpu_custom_call.1} parent=11 // pred_check
          %p246 = pneg %p100
        $region14: #{tpu_custom_call.1} parent=11 // pred_check_branch
          %248 = sbr.rel (%p246) target = $region16
        $region15: #{tpu_custom_call.1} parent=11 // pred_region
          %s250 = ssub.s32 1024, 1024
          %251 = vsyncadd [#allocation8], %s250
          %s252 = sshll.u32 [#allocation9], 4
          %s253 = int_to_ptr.vmem [resolvable:$true] %s252
          %258 = dma.hbm_to_vmem [thread:$0]  %s2, 1024, %s253, [#allocation8], 128, 128, 8
        $region16: #{tpu_custom_call.1} parent=11 // pred_fallthru
          _
        // Predicated region
        $region17: #{tpu_custom_call.1} parent=11 // pred_check
          %p259 = pneg %p121
        $region18: #{tpu_custom_call.1} parent=11 // pred_check_branch
          %261 = sbr.rel (%p259) target = $region20
        $region19: #{tpu_custom_call.1} parent=11 // pred_region
          %s263 = ssub.s32 1024, 1024
          %264 = vsyncadd [#allocation11], %s263
          %s265 = sshll.u32 [#allocation10], 4
          %s266 = int_to_ptr.vmem [resolvable:$true] %s265
          %271 = dma.hbm_to_vmem [thread:$0]  %s3, 1024, %s266, [#allocation11], 128, 128, 8
        $region20: #{tpu_custom_call.1} parent=11 // pred_fallthru
          _
        // Predicated region
        $region21: #{tpu_custom_call.1} parent=11 // pred_check
          %p272 = pneg %p142
        $region22: #{tpu_custom_call.1} parent=11 // pred_check_branch
          %274 = sbr.rel (%p272) target = $region24
        $region23: #{tpu_custom_call.1} parent=11 // pred_region
          %s276 = ssub.s32 16, 16
          %277 = vsyncadd [#allocation6], %s276
          %s279 = sshll.u32 %s4, 4
          %s280 = int_to_ptr.vmem [resolvable:$true] %s279
          %282 = dma.vmem_to_smem %s280, 16, [#allocation12], [#allocation6]
        $region24: #{tpu_custom_call.1} parent=11 // pred_fallthru
          _
        // Predicated region
        $region25: #{tpu_custom_call.1} parent=11 // pred_check
          %p283 = pneg %p163
        $region26: #{tpu_custom_call.1} parent=11 // pred_check_branch
          %285 = sbr.rel (%p283) target = $region28
        $region27: #{tpu_custom_call.1} parent=11 // pred_region
          _
        $region28: #{tpu_custom_call.1} parent=11 // pred_fallthru
          _
        // Predicated region
        $region29: #{tpu_custom_call.1} parent=11 // pred_check
          %p286 = pneg %p184
        $region30: #{tpu_custom_call.1} parent=11 // pred_check_branch
          %288 = sbr.rel (%p286) target = $region32
        $region31: #{tpu_custom_call.1} parent=11 // pred_region
          %s290 = ssub.s32 16, 16
          %291 = vsyncadd [#allocation14], %s290
          %s293 = sshll.u32 %s6, 4
          %s294 = int_to_ptr.vmem [resolvable:$true] %s293
          %296 = dma.vmem_to_smem %s294, 16, [#allocation13], [#allocation14]
        $region32: #{tpu_custom_call.1} parent=11 // pred_fallthru
          _
        // Predicated region
        $region33: #{tpu_custom_call.1} parent=11 // pred_check
          %p297 = pneg %p205
        $region34: #{tpu_custom_call.1} parent=11 // pred_check_branch
          %299 = sbr.rel (%p297) target = $region36
        $region35: #{tpu_custom_call.1} parent=11 // pred_region
          %s301 = ssub.s32 16, 16
          %302 = vsyncadd [#allocation14], %s301
          %s304 = sshll.u32 %s7, 4
          %s305 = int_to_ptr.vmem [resolvable:$true] %s304
          %307 = dma.vmem_to_smem %s305, 16, [#allocation15], [#allocation14]
        $region36: #{tpu_custom_call.1} parent=11 // pred_fallthru
          _
      $region12: #{tpu_custom_call.1} parent=5 // pred_fallthru
        _
      %p308 = scmp.lt.s32.totalorder %s27, 2
      // Predicated region
      $region37: #{tpu_custom_call.1} parent=5 // pred_check
        %p309 = pneg %p308
      $region38: #{tpu_custom_call.1} parent=5 // pred_check_branch
        %311 = sbr.rel (%p309) target = $region40
      $region39: #{tpu_custom_call.1} parent=5 // pred_region
        // Predicated region
        $region41: #{tpu_custom_call.1} parent=39 // pred_check
          %p312 = pneg %p47
        $region42: #{tpu_custom_call.1} parent=39 // pred_check_branch
          %314 = sbr.rel (%p312) target = $region44
        $region43: #{tpu_custom_call.1} parent=39 // pred_region
          %s315 = sand.u32 %s37, 1
          %s316 = scalar_lea.sflag [#allocation4], %s315
          %s317 = sand.u32 %s37, 1
          %s318 = smul.addr %s317, 48
          %s319 = scalar_lea.vmem [#allocation3], %s318
          %s321 = ssub.s32 768, 768
          %322 = vsyncadd %s316, %s321
          %s323 = smul.addr %s27, 6
          %s324 = smul.addr %s323, 128
          %s325 = scalar_lea.hbm %s0, %s324
          %s326 = sshll.u32 %s319, 4
          %s327 = int_to_ptr.vmem [resolvable:$true] %s326
          %332 = dma.hbm_to_vmem [thread:$0]  %s325, 768, %s327, %s316, 128, 128, 8
        $region44: #{tpu_custom_call.1} parent=39 // pred_fallthru
          _
        // Predicated region
        $region45: #{tpu_custom_call.1} parent=39 // pred_check
          %p333 = pneg %p73
        $region46: #{tpu_custom_call.1} parent=39 // pred_check_branch
          %335 = sbr.rel (%p333) target = $region48
        $region47: #{tpu_custom_call.1} parent=39 // pred_region
          %s336 = sand.u32 %s27, 1
          %s337 = scalar_lea.sflag [#allocation8], %s336
          %s338 = sand.u32 %s63, 1
          %s339 = smul.addr %s338, 64
          %s340 = scalar_lea.vmem [#allocation7], %s339
          %s342 = ssub.s32 1024, 1024
          %343 = vsyncadd %s337, %s342
          %s344 = smul.addr %s27, 8
          %s345 = smul.addr %s344, 128
          %s346 = scalar_lea.hbm %s1, %s345
          %s347 = sshll.u32 %s340, 4
          %s348 = int_to_ptr.vmem [resolvable:$true] %s347
          %353 = dma.hbm_to_vmem [thread:$0]  %s346, 1024, %s348, %s337, 128, 128, 8
        $region48: #{tpu_custom_call.1} parent=39 // pred_fallthru
          _
      $region40: #{tpu_custom_call.1} parent=5 // pred_fallthru
        _
      %p354 = scmp.le.s32.totalorder 1, %s27
      %p355 = scmp.lt.s32.totalorder %s27, 3
      %p356 = pnand %p354, %p355
      %p357 = pneg %p356
      // Predicated region
      $region49: #{tpu_custom_call.1} parent=5 // pred_check
        _
      $region50: #{tpu_custom_call.1} parent=5 // pred_check_branch
        %359 = sbr.rel (%p356) target = $region52
      $region51: #{tpu_custom_call.1} parent=5 // pred_region
        %s360 = ssub.s32 %s27, 1
        %s361 = sand.u32 %s40, 1
        %s362 = scalar_lea.sflag [#allocation4], %s361
        %s363 = sand.u32 %s40, 1
        %s364 = smul.addr %s363, 48
        %s365 = scalar_lea.vmem [#allocation3], %s364
        // Predicated region
        $region53: #{tpu_custom_call.1} parent=51 // pred_check
          %p366 = pneg %p53
        $region54: #{tpu_custom_call.1} parent=51 // pred_check_branch
          %368 = sbr.rel (%p366) target = $region56
        $region55: #{tpu_custom_call.1} parent=51 // pred_region
          %369 = dma.done %s362, 768
        $region56: #{tpu_custom_call.1} parent=51 // pred_fallthru
          _
        %s370 = sand.u32 %s32, 1
        %s371 = scalar_lea.sflag [#allocation8], %s370
        %s372 = sand.u32 %s66, 1
        %s373 = smul.addr %s372, 64
        %s374 = scalar_lea.vmem [#allocation7], %s373
        // Predicated region
        $region57: #{tpu_custom_call.1} parent=51 // pred_check
          %p375 = pneg %p79
        $region58: #{tpu_custom_call.1} parent=51 // pred_check_branch
          %377 = sbr.rel (%p375) target = $region60
        $region59: #{tpu_custom_call.1} parent=51 // pred_region
          %378 = dma.done %s371, 1024
        $region60: #{tpu_custom_call.1} parent=51 // pred_fallthru
          _
        // Predicated region
        $region61: #{tpu_custom_call.1} parent=51 // pred_check
          %p379 = pneg %p100
        $region62: #{tpu_custom_call.1} parent=51 // pred_check_branch
          %381 = sbr.rel (%p379) target = $region64
        $region63: #{tpu_custom_call.1} parent=51 // pred_region
          %382 = dma.done [#allocation8], 1024
        $region64: #{tpu_custom_call.1} parent=51 // pred_fallthru
          _
        // Predicated region
        $region65: #{tpu_custom_call.1} parent=51 // pred_check
          %p383 = pneg %p121
        $region66: #{tpu_custom_call.1} parent=51 // pred_check_branch
          %385 = sbr.rel (%p383) target = $region68
        $region67: #{tpu_custom_call.1} parent=51 // pred_region
          %386 = dma.done [#allocation11], 1024
        $region68: #{tpu_custom_call.1} parent=51 // pred_fallthru
          _
        // Predicated region
        $region69: #{tpu_custom_call.1} parent=51 // pred_check
          %p387 = pneg %p142
        $region70: #{tpu_custom_call.1} parent=51 // pred_check_branch
          %389 = sbr.rel (%p387) target = $region72
        $region71: #{tpu_custom_call.1} parent=51 // pred_region
          %390 = dma.done [#allocation6], 16
        $region72: #{tpu_custom_call.1} parent=51 // pred_fallthru
          _
        // Predicated region
        $region73: #{tpu_custom_call.1} parent=51 // pred_check
          %p391 = pneg %p184
        $region74: #{tpu_custom_call.1} parent=51 // pred_check_branch
          %393 = sbr.rel (%p391) target = $region76
        $region75: #{tpu_custom_call.1} parent=51 // pred_region
          %394 = dma.done [#allocation14], 16
        $region76: #{tpu_custom_call.1} parent=51 // pred_fallthru
          _
        // Predicated region
        $region77: #{tpu_custom_call.1} parent=51 // pred_check
          %p395 = pneg %p205
        $region78: #{tpu_custom_call.1} parent=51 // pred_check_branch
          %397 = sbr.rel (%p395) target = $region80
        $region79: #{tpu_custom_call.1} parent=51 // pred_region
          %398 = dma.done [#allocation14], 16
        $region80: #{tpu_custom_call.1} parent=51 // pred_fallthru
          _
        %399 = sfence
        %s400 = sand.u32 %s40, 1
        %s401 = scalar_lea.sflag [#allocation4], %s400
        %s402 = sand.u32 %s40, 1
        %s403 = smul.addr %s402, 48
        %s404 = scalar_lea.vmem [#allocation3], %s403
        %p405 = pneg %p53
        %p406 = pneg %p50
        %s407 = sand.u32 %s32, 1
        %s408 = scalar_lea.sflag [#allocation8], %s407
        %s409 = sand.u32 %s66, 1
        %s410 = smul.addr %s409, 64
        %s411 = scalar_lea.vmem [#allocation7], %s410
        %p412 = pneg %p79
        %p413 = pneg %p76
        %p414 = pneg %p100
        %p415 = pneg %p97
        %p416 = pneg %p121
        %p417 = pneg %p118
        %p418 = pneg %p142
        %p419 = pneg %p139
        %p420 = pneg %p163
        %p421 = pneg %p160
        %p422 = pneg %p184
        %p423 = pneg %p181
        %p424 = pneg %p205
        %p425 = pneg %p202
        %p426 = pneg %p231
        %p427 = pneg %p228
        %s428 = sand.u32 %s218, 1
        %s429 = scalar_lea.sflag [#allocation5], %s428
        %s430 = sand.u32 %s218, 1
        %s431 = smul.addr %s430, 64
        %s432 = scalar_lea.vmem [#allocation16], %s431
        %v433 = vld [vmem:[%s374] sm:$0xff]
        %v434 = vld [vmem:[%s374 + $0x8] sm:$0xff]
        %s435 = scalar_lea.vmem %s374, 16 [#allocation7]
        %v436 = vld [vmem:[%s435] sm:$0xff]
        %v437 = vld [vmem:[%s435 + $0x8] sm:$0xff]
        %s438 = scalar_lea.vmem %s374, 32 [#allocation7]
        %v439 = vld [vmem:[%s438] sm:$0xff]
        %v440 = vld [vmem:[%s438 + $0x8] sm:$0xff]
        %s441 = scalar_lea.vmem %s374, 48 [#allocation7]
        %v442 = vld [vmem:[%s441] sm:$0xff]
        %v443 = vld [vmem:[%s441 + $0x8] sm:$0xff]
        %v444 = vmax.f32 %v433, %v436
        %v445 = vmax.f32 %v434, %v437
        %v446 = vmax.f32 %v444, %v439
        %v447 = vmax.f32 %v445, %v440
        %v448 = vmax.f32 %v446, %v442
        %v449 = vmax.f32 %v447, %v443
        %v450 = vsub.f32 %v433, %v448
        %v451 = vsub.f32 %v434, %v449
        %v452 = vmul.f32 %v450, 1.442695
        %v453 = vpow.pop %v452
        %v454 = vmul.f32 %v451, 1.442695
        %v455 = vpow.pop %v454
        %v456 = vsub.f32 %v436, %v448
        %v457 = vsub.f32 %v437, %v449
        %v458 = vmul.f32 %v456, 1.442695
        %v459 = vpow.pop %v458
        %v460 = vmul.f32 %v457, 1.442695
        %v461 = vpow.pop %v460
        %v462 = vsub.f32 %v439, %v448
        %v463 = vsub.f32 %v440, %v449
        %v464 = vmul.f32 %v462, 1.442695
        %v465 = vpow.pop %v464
        %v466 = vmul.f32 %v463, 1.442695
        %v467 = vpow.pop %v466
        %v468 = vsub.f32 %v442, %v448
        %v469 = vsub.f32 %v443, %v449
        %v470 = vmul.f32 %v468, 1.442695
        %v471 = vpow.pop %v470
        %v472 = vmul.f32 %v469, 1.442695
        %v473 = vpow.pop %v472
        %v474 = vadd.f32 %v453, %v459
        %v475 = vadd.f32 %v455, %v461
        %v476 = vadd.f32 %v474, %v465
        %v477 = vadd.f32 %v475, %v467
        %v478 = vadd.f32 %v476, %v471
        %v479 = vadd.f32 %v477, %v473
        %v480 = vrcp.pop %v478
        %v481 = vrcp.pop %v479
        %v482 = vmul.f32 %v453, %v480
        %v483 = vmul.f32 %v455, %v481
        %v484 = vmul.f32 %v459, %v480
        %v485 = vmul.f32 %v461, %v481
        %v486 = vmul.f32 %v465, %v480
        %v487 = vmul.f32 %v467, %v481
        %v488 = vmul.f32 %v471, %v480
        %v489 = vmul.f32 %v473, %v481
        %v490 = vld [vmem:[%s365] sm:$0xff]
        %v491 = vld [vmem:[%s365 + $0x8] sm:$0xff]
        %s492 = scalar_lea.vmem %s365, 16 [#allocation3]
        %v493 = vld [vmem:[%s492] sm:$0xff]
        %v494 = vld [vmem:[%s492 + $0x8] sm:$0xff]
        %s495 = scalar_lea.vmem %s365, 32 [#allocation3]
        %v496 = vld [vmem:[%s495] sm:$0xff]
        %v497 = vld [vmem:[%s495 + $0x8] sm:$0xff]
        %s498 = sld [smem:[#allocation12]]
        %v499 = vstv %s498
        %v500 = vmul.f32 %v499, %v490
        %v501 = vmul.f32 %v499, %v491
        %s502 = sld [smem:[#allocation12 + $0x1]]
        %v503 = vstv %s502
        %v504 = vmul.f32 %v503, %v493
        %v505 = vmul.f32 %v503, %v494
        %v506 = vadd.f32 %v500, %v504
        %v507 = vadd.f32 %v501, %v505
        %s508 = sld [smem:[#allocation12 + $0x2]]
        %v509 = vstv %s508
        %v510 = vmul.f32 %v509, %v496
        %v511 = vmul.f32 %v509, %v497
        %v512 = vadd.f32 %v506, %v510
        %v513 = vadd.f32 %v507, %v511
        %v514 = vld [vmem:[#allocation9] sm:$0xff]
        %v515 = vld [vmem:[#allocation9 + $0x8] sm:$0xff]
        %vm516 = vcmask 130048
        %v518 = vsel %vm516, %v512, 0
        %v521 = vsel %vm516, %v513, 0
        %523 = vmatprep.subr.mxu0 0.0
        %524 = vmatpush1.msra.mxu0 0.0
        %525 = vmatprep.subr.mxu0 0.0
        %526 = vmatpush1.msra.mxu0 0.0
        %527 = vmatprep.subr.mxu0 0.0
        %528 = vmatpush1.msra.mxu0 0.0
        %529 = vmatprep.subr.mxu0 0.0
        %530 = vmatpush1.msra.mxu0 0.0
        %531 = vmatprep.subr.mxu0 0.0
        %532 = vmatpush1.msra.mxu0 0.0
        %533 = vmatprep.subr.mxu0 0.0
        %534 = vmatpush1.msra.mxu0 0.0
        %535 = vmatprep.subr.mxu0 0.0
        %536 = vmatpush1.msra.mxu0 0.0
        %537 = vmatprep.subr.mxu0 0.0
        %538 = vmatpush1.msra.mxu0 0.0
        %539 = vmatprep.subr.mxu0 0.0
        %540 = vmatpush1.msra.mxu0 0.0
        %541 = vmatprep.subr.mxu0 0.0
        %542 = vmatpush1.msra.mxu0 0.0
        %543 = vmatprep.subr.mxu0 0.0
        %544 = vmatpush1.msra.mxu0 0.0
        %545 = vmatprep.subr.mxu0 0.0
        %546 = vmatpush1.msra.mxu0 0.0
        %547 = vmatprep.subr.mxu0 0.0
        %548 = vmatpush1.msra.mxu0 0.0
        %549 = vmatprep.subr.mxu0 0.0
        %550 = vmatpush1.msra.mxu0 0.0
        %551 = vmatprep.subr.mxu0 0.0
        %552 = vmatpush1.msra.mxu0 %v515
        %553 = vmatprep.subr.mxu0 0.0
        %554 = vmatpush1.msra.mxu0 %v514
        %555 = vmatprep.subr.mxu0 0.0
        %556 = vmatpush2.msra.mxu0 0.0
        %557 = vmatprep.subr.mxu0 0.0
        %558 = vmatpush2.msra.mxu0 0.0
        %559 = vmatprep.subr.mxu0 0.0
        %560 = vmatpush2.msra.mxu0 0.0
        %561 = vmatprep.subr.mxu0 0.0
        %562 = vmatpush2.msra.mxu0 0.0
        %563 = vmatprep.subr.mxu0 0.0
        %564 = vmatpush2.msra.mxu0 0.0
        %565 = vmatprep.subr.mxu0 0.0
        %566 = vmatpush2.msra.mxu0 0.0
        %567 = vmatprep.subr.mxu0 0.0
        %568 = vmatpush2.msra.mxu0 0.0
        %569 = vmatprep.subr.mxu0 0.0
        %570 = vmatpush2.msra.mxu0 0.0
        %571 = vmatprep.subr.mxu0 0.0
        %572 = vmatpush2.msra.mxu0 0.0
        %573 = vmatprep.subr.mxu0 0.0
        %574 = vmatpush2.msra.mxu0 0.0
        %575 = vmatprep.subr.mxu0 0.0
        %576 = vmatpush2.msra.mxu0 0.0
        %577 = vmatprep.subr.mxu0 0.0
        %578 = vmatpush2.msra.mxu0 0.0
        %579 = vmatprep.subr.mxu0 0.0
        %580 = vmatpush2.msra.mxu0 0.0
        %581 = vmatprep.subr.mxu0 0.0
        %582 = vmatpush2.msra.mxu0 0.0
        %583 = vmatprep.subr.mxu0 0.0
        %584 = vmatpush2.msra.mxu0 0.0
        %585 = vmatprep.subr.mxu0 0.0
        %586 = vmatpush2.msra.mxu0 0.0
        %587 = vmatprep.mubr.f32.mxu0 0.0
        %588 = vmatmul.mubr.f32.gmra.mxu0 %v518
        %v589 = vpop.f32.mrf.mxu0
        %v590 = vadd.f32 0.0, %v589
        %v591 = vpop.f32.mrf.mxu0
        %592 = vmatprep.mubr.f32.mxu0 0.0
        %593 = vmatmul.mubr.f32.gmra.mxu0 %v521
        %v594 = vpop.f32.mrf.mxu0
        %v595 = vadd.f32 0.0, %v594
        %v596 = vpop.f32.mrf.mxu0
        %597 = vdwg.mxu0
        %v598 = vld [vmem:[#allocation10] sm:$0xff]
        %v599 = vld [vmem:[#allocation10 + $0x8] sm:$0xff]
        %s600 = sld [smem:[#allocation12 + $0x3]]
        %v601 = vstv %s600
        %v602 = vmul.f32 %v601, %v490
        %v603 = vmul.f32 %v601, %v491
        %s604 = sld [smem:[#allocation12 + $0x4]]
        %v605 = vstv %s604
        %v606 = vmul.f32 %v605, %v493
        %v607 = vmul.f32 %v605, %v494
        %v608 = vadd.f32 %v602, %v606
        %v609 = vadd.f32 %v603, %v607
        %s610 = sld [smem:[#allocation12 + $0x5]]
        %v611 = vstv %s610
        %v612 = vmul.f32 %v611, %v496
        %v613 = vmul.f32 %v611, %v497
        %v614 = vadd.f32 %v608, %v612
        %v615 = vadd.f32 %v609, %v613
        %s616 = scalar_lea.vmem [#allocation9], 16
        %v617 = vld [vmem:[%s616] sm:$0xff]
        %v618 = vld [vmem:[%s616 + $0x8] sm:$0xff]
        %v620 = vsel %vm516, %v614, 0
        %v623 = vsel %vm516, %v615, 0
        %625 = vmatprep.subr.mxu0 0.0
        %626 = vmatpush1.msra.mxu0 0.0
        %627 = vmatprep.subr.mxu0 0.0
        %628 = vmatpush1.msra.mxu0 0.0
        %629 = vmatprep.subr.mxu0 0.0
        %630 = vmatpush1.msra.mxu0 0.0
        %631 = vmatprep.subr.mxu0 0.0
        %632 = vmatpush1.msra.mxu0 0.0
        %633 = vmatprep.subr.mxu0 0.0
        %634 = vmatpush1.msra.mxu0 0.0
        %635 = vmatprep.subr.mxu0 0.0
        %636 = vmatpush1.msra.mxu0 0.0
        %637 = vmatprep.subr.mxu0 0.0
        %638 = vmatpush1.msra.mxu0 0.0
        %639 = vmatprep.subr.mxu0 0.0
        %640 = vmatpush1.msra.mxu0 0.0
        %641 = vmatprep.subr.mxu0 0.0
        %642 = vmatpush1.msra.mxu0 0.0
        %643 = vmatprep.subr.mxu0 0.0
        %644 = vmatpush1.msra.mxu0 0.0
        %645 = vmatprep.subr.mxu0 0.0
        %646 = vmatpush1.msra.mxu0 0.0
        %647 = vmatprep.subr.mxu0 0.0
        %648 = vmatpush1.msra.mxu0 0.0
        %649 = vmatprep.subr.mxu0 0.0
        %650 = vmatpush1.msra.mxu0 0.0
        %651 = vmatprep.subr.mxu0 0.0
        %652 = vmatpush1.msra.mxu0 0.0
        %653 = vmatprep.subr.mxu0 0.0
        %654 = vmatpush1.msra.mxu0 %v618
        %655 = vmatprep.subr.mxu0 0.0
        %656 = vmatpush1.msra.mxu0 %v617
        %657 = vmatprep.subr.mxu0 0.0
        %658 = vmatpush2.msra.mxu0 0.0
        %659 = vmatprep.subr.mxu0 0.0
        %660 = vmatpush2.msra.mxu0 0.0
        %661 = vmatprep.subr.mxu0 0.0
        %662 = vmatpush2.msra.mxu0 0.0
        %663 = vmatprep.subr.mxu0 0.0
        %664 = vmatpush2.msra.mxu0 0.0
        %665 = vmatprep.subr.mxu0 0.0
        %666 = vmatpush2.msra.mxu0 0.0
        %667 = vmatprep.subr.mxu0 0.0
        %668 = vmatpush2.msra.mxu0 0.0
        %669 = vmatprep.subr.mxu0 0.0
        %670 = vmatpush2.msra.mxu0 0.0
        %671 = vmatprep.subr.mxu0 0.0
        %672 = vmatpush2.msra.mxu0 0.0
        %673 = vmatprep.subr.mxu0 0.0
        %674 = vmatpush2.msra.mxu0 0.0
        %675 = vmatprep.subr.mxu0 0.0
        %676 = vmatpush2.msra.mxu0 0.0
        %677 = vmatprep.subr.mxu0 0.0
        %678 = vmatpush2.msra.mxu0 0.0
        %679 = vmatprep.subr.mxu0 0.0
        %680 = vmatpush2.msra.mxu0 0.0
        %681 = vmatprep.subr.mxu0 0.0
        %682 = vmatpush2.msra.mxu0 0.0
        %683 = vmatprep.subr.mxu0 0.0
        %684 = vmatpush2.msra.mxu0 0.0
        %685 = vmatprep.subr.mxu0 0.0
        %686 = vmatpush2.msra.mxu0 0.0
        %687 = vmatprep.subr.mxu0 0.0
        %688 = vmatpush2.msra.mxu0 0.0
        %689 = vmatprep.mubr.f32.mxu0 0.0
        %690 = vmatmul.mubr.f32.gmra.mxu0 %v620
        %v691 = vpop.f32.mrf.mxu0
        %v692 = vadd.f32 0.0, %v691
        %v693 = vpop.f32.mrf.mxu0
        %694 = vmatprep.mubr.f32.mxu0 0.0
        %695 = vmatmul.mubr.f32.gmra.mxu0 %v623
        %v696 = vpop.f32.mrf.mxu0
        %v697 = vadd.f32 0.0, %v696
        %v698 = vpop.f32.mrf.mxu0
        %699 = vdwg.mxu0
        %s700 = scalar_lea.vmem [#allocation10], 16
        %v701 = vld [vmem:[%s700] sm:$0xff]
        %v702 = vld [vmem:[%s700 + $0x8] sm:$0xff]
        %v704 = vsel %vm516, %v701, 0
        %v707 = vsel %vm516, %v702, 0
        %709 = vmatprep.subr.mxu0 0.0
        %710 = vmatpush1.msra.mxu0 0.0
        %711 = vmatprep.subr.mxu0 0.0
        %712 = vmatpush1.msra.mxu0 0.0
        %713 = vmatprep.subr.mxu0 0.0
        %714 = vmatpush1.msra.mxu0 0.0
        %715 = vmatprep.subr.mxu0 0.0
        %716 = vmatpush1.msra.mxu0 0.0
        %717 = vmatprep.subr.mxu0 0.0
        %718 = vmatpush1.msra.mxu0 0.0
        %719 = vmatprep.subr.mxu0 0.0
        %720 = vmatpush1.msra.mxu0 0.0
        %721 = vmatprep.subr.mxu0 0.0
        %722 = vmatpush1.msra.mxu0 0.0
        %723 = vmatprep.subr.mxu0 0.0
        %724 = vmatpush1.msra.mxu0 0.0
        %725 = vmatprep.subr.mxu0 0.0
        %726 = vmatpush1.msra.mxu0 0.0
        %727 = vmatprep.subr.mxu0 0.0
        %728 = vmatpush1.msra.mxu0 0.0
        %729 = vmatprep.subr.mxu0 0.0
        %730 = vmatpush1.msra.mxu0 0.0
        %731 = vmatprep.subr.mxu0 0.0
        %732 = vmatpush1.msra.mxu0 0.0
        %733 = vmatprep.subr.mxu0 0.0
        %734 = vmatpush1.msra.mxu0 0.0
        %735 = vmatprep.subr.mxu0 0.0
        %736 = vmatpush1.msra.mxu0 0.0
        %737 = vmatprep.subr.mxu0 0.0
        %738 = vmatpush1.msra.mxu0 %v697
        %739 = vmatprep.subr.mxu0 0.0
        %740 = vmatpush1.msra.mxu0 %v692
        %741 = vmatprep.subr.mxu0 0.0
        %742 = vmatpush2.msra.mxu0 0.0
        %743 = vmatprep.subr.mxu0 0.0
        %744 = vmatpush2.msra.mxu0 0.0
        %745 = vmatprep.subr.mxu0 0.0
        %746 = vmatpush2.msra.mxu0 0.0
        %747 = vmatprep.subr.mxu0 0.0
        %748 = vmatpush2.msra.mxu0 0.0
        %749 = vmatprep.subr.mxu0 0.0
        %750 = vmatpush2.msra.mxu0 0.0
        %751 = vmatprep.subr.mxu0 0.0
        %752 = vmatpush2.msra.mxu0 0.0
        %753 = vmatprep.subr.mxu0 0.0
        %754 = vmatpush2.msra.mxu0 0.0
        %755 = vmatprep.subr.mxu0 0.0
        %756 = vmatpush2.msra.mxu0 0.0
        %757 = vmatprep.subr.mxu0 0.0
        %758 = vmatpush2.msra.mxu0 0.0
        %759 = vmatprep.subr.mxu0 0.0
        %760 = vmatpush2.msra.mxu0 0.0
        %761 = vmatprep.subr.mxu0 0.0
        %762 = vmatpush2.msra.mxu0 0.0
        %763 = vmatprep.subr.mxu0 0.0
        %764 = vmatpush2.msra.mxu0 0.0
        %765 = vmatprep.subr.mxu0 0.0
        %766 = vmatpush2.msra.mxu0 0.0
        %767 = vmatprep.subr.mxu0 0.0
        %768 = vmatpush2.msra.mxu0 0.0
        %769 = vmatprep.subr.mxu0 0.0
        %770 = vmatpush2.msra.mxu0 0.0
        %771 = vmatprep.subr.mxu0 0.0
        %772 = vmatpush2.msra.mxu0 0.0
        %773 = vmatprep.mubr.f32.mxu0 0.0
        %774 = vmatmul.mubr.f32.gmra.mxu0 %v704
        %v775 = vpop.f32.mrf.mxu0
        %v776 = vadd.f32 0.0, %v775
        %v777 = vpop.f32.mrf.mxu0
        %778 = vmatprep.mubr.f32.mxu0 0.0
        %779 = vmatmul.mubr.f32.gmra.mxu0 %v707
        %v780 = vpop.f32.mrf.mxu0
        %v781 = vadd.f32 0.0, %v780
        %v782 = vpop.f32.mrf.mxu0
        %783 = vdwg.mxu0
        %v785 = vsel %vm516, %v598, 0
        %v788 = vsel %vm516, %v599, 0
        %790 = vmatprep.subr.mxu0 0.0
        %791 = vmatpush1.msra.mxu0 0.0
        %792 = vmatprep.subr.mxu0 0.0
        %793 = vmatpush1.msra.mxu0 0.0
        %794 = vmatprep.subr.mxu0 0.0
        %795 = vmatpush1.msra.mxu0 0.0
        %796 = vmatprep.subr.mxu0 0.0
        %797 = vmatpush1.msra.mxu0 0.0
        %798 = vmatprep.subr.mxu0 0.0
        %799 = vmatpush1.msra.mxu0 0.0
        %800 = vmatprep.subr.mxu0 0.0
        %801 = vmatpush1.msra.mxu0 0.0
        %802 = vmatprep.subr.mxu0 0.0
        %803 = vmatpush1.msra.mxu0 0.0
        %804 = vmatprep.subr.mxu0 0.0
        %805 = vmatpush1.msra.mxu0 0.0
        %806 = vmatprep.subr.mxu0 0.0
        %807 = vmatpush1.msra.mxu0 0.0
        %808 = vmatprep.subr.mxu0 0.0
        %809 = vmatpush1.msra.mxu0 0.0
        %810 = vmatprep.subr.mxu0 0.0
        %811 = vmatpush1.msra.mxu0 0.0
        %812 = vmatprep.subr.mxu0 0.0
        %813 = vmatpush1.msra.mxu0 0.0
        %814 = vmatprep.subr.mxu0 0.0
        %815 = vmatpush1.msra.mxu0 0.0
        %816 = vmatprep.subr.mxu0 0.0
        %817 = vmatpush1.msra.mxu0 0.0
        %818 = vmatprep.subr.mxu0 0.0
        %819 = vmatpush1.msra.mxu0 %v595
        %820 = vmatprep.subr.mxu0 0.0
        %821 = vmatpush1.msra.mxu0 %v590
        %822 = vmatprep.subr.mxu0 0.0
        %823 = vmatpush2.msra.mxu0 0.0
        %824 = vmatprep.subr.mxu0 0.0
        %825 = vmatpush2.msra.mxu0 0.0
        %826 = vmatprep.subr.mxu0 0.0
        %827 = vmatpush2.msra.mxu0 0.0
        %828 = vmatprep.subr.mxu0 0.0
        %829 = vmatpush2.msra.mxu0 0.0
        %830 = vmatprep.subr.mxu0 0.0
        %831 = vmatpush2.msra.mxu0 0.0
        %832 = vmatprep.subr.mxu0 0.0
        %833 = vmatpush2.msra.mxu0 0.0
        %834 = vmatprep.subr.mxu0 0.0
        %835 = vmatpush2.msra.mxu0 0.0
        %836 = vmatprep.subr.mxu0 0.0
        %837 = vmatpush2.msra.mxu0 0.0
        %838 = vmatprep.subr.mxu0 0.0
        %839 = vmatpush2.msra.mxu0 0.0
        %840 = vmatprep.subr.mxu0 0.0
        %841 = vmatpush2.msra.mxu0 0.0
        %842 = vmatprep.subr.mxu0 0.0
        %843 = vmatpush2.msra.mxu0 0.0
        %844 = vmatprep.subr.mxu0 0.0
        %845 = vmatpush2.msra.mxu0 0.0
        %846 = vmatprep.subr.mxu0 0.0
        %847 = vmatpush2.msra.mxu0 0.0
        %848 = vmatprep.subr.mxu0 0.0
        %849 = vmatpush2.msra.mxu0 0.0
        %850 = vmatprep.subr.mxu0 0.0
        %851 = vmatpush2.msra.mxu0 0.0
        %852 = vmatprep.subr.mxu0 0.0
        %853 = vmatpush2.msra.mxu0 0.0
        %854 = vmatprep.mubr.f32.mxu0 0.0
        %855 = vmatmul.mubr.f32.gmra.mxu0 %v785
        %v856 = vpop.f32.mrf.mxu0
        %v857 = vadd.f32 %v776, %v856
        %v858 = vpop.f32.mrf.mxu0
        %859 = vmatprep.mubr.f32.mxu0 0.0
        %860 = vmatmul.mubr.f32.gmra.mxu0 %v788
        %v861 = vpop.f32.mrf.mxu0
        %v862 = vadd.f32 %v781, %v861
        %v863 = vpop.f32.mrf.mxu0
        %864 = vdwg.mxu0
        %s865 = sld [smem:[#allocation12 + $0x6]]
        %v866 = vstv %s865
        %v867 = vmul.f32 %v866, %v490
        %v868 = vmul.f32 %v866, %v491
        %s869 = sld [smem:[#allocation12 + $0x7]]
        %v870 = vstv %s869
        %v871 = vmul.f32 %v870, %v493
        %v872 = vmul.f32 %v870, %v494
        %v873 = vadd.f32 %v867, %v871
        %v874 = vadd.f32 %v868, %v872
        %s875 = sld [smem:[#allocation12 + $0x8]]
        %v876 = vstv %s875
        %v877 = vmul.f32 %v876, %v496
        %v878 = vmul.f32 %v876, %v497
        %v879 = vadd.f32 %v873, %v877
        %v880 = vadd.f32 %v874, %v878
        %s881 = scalar_lea.vmem [#allocation9], 32
        %v882 = vld [vmem:[%s881] sm:$0xff]
        %v883 = vld [vmem:[%s881 + $0x8] sm:$0xff]
        %v885 = vsel %vm516, %v879, 0
        %v888 = vsel %vm516, %v880, 0
        %890 = vmatprep.subr.mxu0 0.0
        %891 = vmatpush1.msra.mxu0 0.0
        %892 = vmatprep.subr.mxu0 0.0
        %893 = vmatpush1.msra.mxu0 0.0
        %894 = vmatprep.subr.mxu0 0.0
        %895 = vmatpush1.msra.mxu0 0.0
        %896 = vmatprep.subr.mxu0 0.0
        %897 = vmatpush1.msra.mxu0 0.0
        %898 = vmatprep.subr.mxu0 0.0
        %899 = vmatpush1.msra.mxu0 0.0
        %900 = vmatprep.subr.mxu0 0.0
        %901 = vmatpush1.msra.mxu0 0.0
        %902 = vmatprep.subr.mxu0 0.0
        %903 = vmatpush1.msra.mxu0 0.0
        %904 = vmatprep.subr.mxu0 0.0
        %905 = vmatpush1.msra.mxu0 0.0
        %906 = vmatprep.subr.mxu0 0.0
        %907 = vmatpush1.msra.mxu0 0.0
        %908 = vmatprep.subr.mxu0 0.0
        %909 = vmatpush1.msra.mxu0 0.0
        %910 = vmatprep.subr.mxu0 0.0
        %911 = vmatpush1.msra.mxu0 0.0
        %912 = vmatprep.subr.mxu0 0.0
        %913 = vmatpush1.msra.mxu0 0.0
        %914 = vmatprep.subr.mxu0 0.0
        %915 = vmatpush1.msra.mxu0 0.0
        %916 = vmatprep.subr.mxu0 0.0
        %917 = vmatpush1.msra.mxu0 0.0
        %918 = vmatprep.subr.mxu0 0.0
        %919 = vmatpush1.msra.mxu0 %v883
        %920 = vmatprep.subr.mxu0 0.0
        %921 = vmatpush1.msra.mxu0 %v882
        %922 = vmatprep.subr.mxu0 0.0
        %923 = vmatpush2.msra.mxu0 0.0
        %924 = vmatprep.subr.mxu0 0.0
        %925 = vmatpush2.msra.mxu0 0.0
        %926 = vmatprep.subr.mxu0 0.0
        %927 = vmatpush2.msra.mxu0 0.0
        %928 = vmatprep.subr.mxu0 0.0
        %929 = vmatpush2.msra.mxu0 0.0
        %930 = vmatprep.subr.mxu0 0.0
        %931 = vmatpush2.msra.mxu0 0.0
        %932 = vmatprep.subr.mxu0 0.0
        %933 = vmatpush2.msra.mxu0 0.0
        %934 = vmatprep.subr.mxu0 0.0
        %935 = vmatpush2.msra.mxu0 0.0
        %936 = vmatprep.subr.mxu0 0.0
        %937 = vmatpush2.msra.mxu0 0.0
        %938 = vmatprep.subr.mxu0 0.0
        %939 = vmatpush2.msra.mxu0 0.0
        %940 = vmatprep.subr.mxu0 0.0
        %941 = vmatpush2.msra.mxu0 0.0
        %942 = vmatprep.subr.mxu0 0.0
        %943 = vmatpush2.msra.mxu0 0.0
        %944 = vmatprep.subr.mxu0 0.0
        %945 = vmatpush2.msra.mxu0 0.0
        %946 = vmatprep.subr.mxu0 0.0
        %947 = vmatpush2.msra.mxu0 0.0
        %948 = vmatprep.subr.mxu0 0.0
        %949 = vmatpush2.msra.mxu0 0.0
        %950 = vmatprep.subr.mxu0 0.0
        %951 = vmatpush2.msra.mxu0 0.0
        %952 = vmatprep.subr.mxu0 0.0
        %953 = vmatpush2.msra.mxu0 0.0
        %954 = vmatprep.mubr.f32.mxu0 0.0
        %955 = vmatmul.mubr.f32.gmra.mxu0 %v885
        %v956 = vpop.f32.mrf.mxu0
        %v957 = vadd.f32 0.0, %v956
        %v958 = vpop.f32.mrf.mxu0
        %959 = vmatprep.mubr.f32.mxu0 0.0
        %960 = vmatmul.mubr.f32.gmra.mxu0 %v888
        %v961 = vpop.f32.mrf.mxu0
        %v962 = vadd.f32 0.0, %v961
        %v963 = vpop.f32.mrf.mxu0
        %964 = vdwg.mxu0
        %s965 = scalar_lea.vmem [#allocation10], 32
        %v966 = vld [vmem:[%s965] sm:$0xff]
        %v967 = vld [vmem:[%s965 + $0x8] sm:$0xff]
        %v969 = vsel %vm516, %v966, 0
        %v972 = vsel %vm516, %v967, 0
        %974 = vmatprep.subr.mxu0 0.0
        %975 = vmatpush1.msra.mxu0 0.0
        %976 = vmatprep.subr.mxu0 0.0
        %977 = vmatpush1.msra.mxu0 0.0
        %978 = vmatprep.subr.mxu0 0.0
        %979 = vmatpush1.msra.mxu0 0.0
        %980 = vmatprep.subr.mxu0 0.0
        %981 = vmatpush1.msra.mxu0 0.0
        %982 = vmatprep.subr.mxu0 0.0
        %983 = vmatpush1.msra.mxu0 0.0
        %984 = vmatprep.subr.mxu0 0.0
        %985 = vmatpush1.msra.mxu0 0.0
        %986 = vmatprep.subr.mxu0 0.0
        %987 = vmatpush1.msra.mxu0 0.0
        %988 = vmatprep.subr.mxu0 0.0
        %989 = vmatpush1.msra.mxu0 0.0
        %990 = vmatprep.subr.mxu0 0.0
        %991 = vmatpush1.msra.mxu0 0.0
        %992 = vmatprep.subr.mxu0 0.0
        %993 = vmatpush1.msra.mxu0 0.0
        %994 = vmatprep.subr.mxu0 0.0
        %995 = vmatpush1.msra.mxu0 0.0
        %996 = vmatprep.subr.mxu0 0.0
        %997 = vmatpush1.msra.mxu0 0.0
        %998 = vmatprep.subr.mxu0 0.0
        %999 = vmatpush1.msra.mxu0 0.0
        %1000 = vmatprep.subr.mxu0 0.0
        %1001 = vmatpush1.msra.mxu0 0.0
        %1002 = vmatprep.subr.mxu0 0.0
        %1003 = vmatpush1.msra.mxu0 %v962
        %1004 = vmatprep.subr.mxu0 0.0
        %1005 = vmatpush1.msra.mxu0 %v957
        %1006 = vmatprep.subr.mxu0 0.0
        %1007 = vmatpush2.msra.mxu0 0.0
        %1008 = vmatprep.subr.mxu0 0.0
        %1009 = vmatpush2.msra.mxu0 0.0
        %1010 = vmatprep.subr.mxu0 0.0
        %1011 = vmatpush2.msra.mxu0 0.0
        %1012 = vmatprep.subr.mxu0 0.0
        %1013 = vmatpush2.msra.mxu0 0.0
        %1014 = vmatprep.subr.mxu0 0.0
        %1015 = vmatpush2.msra.mxu0 0.0
        %1016 = vmatprep.subr.mxu0 0.0
        %1017 = vmatpush2.msra.mxu0 0.0
        %1018 = vmatprep.subr.mxu0 0.0
        %1019 = vmatpush2.msra.mxu0 0.0
        %1020 = vmatprep.subr.mxu0 0.0
        %1021 = vmatpush2.msra.mxu0 0.0
        %1022 = vmatprep.subr.mxu0 0.0
        %1023 = vmatpush2.msra.mxu0 0.0
        %1024 = vmatprep.subr.mxu0 0.0
        %1025 = vmatpush2.msra.mxu0 0.0
        %1026 = vmatprep.subr.mxu0 0.0
        %1027 = vmatpush2.msra.mxu0 0.0
        %1028 = vmatprep.subr.mxu0 0.0
        %1029 = vmatpush2.msra.mxu0 0.0
        %1030 = vmatprep.subr.mxu0 0.0
        %1031 = vmatpush2.msra.mxu0 0.0
        %1032 = vmatprep.subr.mxu0 0.0
        %1033 = vmatpush2.msra.mxu0 0.0
        %1034 = vmatprep.subr.mxu0 0.0
        %1035 = vmatpush2.msra.mxu0 0.0
        %1036 = vmatprep.subr.mxu0 0.0
        %1037 = vmatpush2.msra.mxu0 0.0
        %1038 = vmatprep.mubr.f32.mxu0 0.0
        %1039 = vmatmul.mubr.f32.gmra.mxu0 %v969
        %v1040 = vpop.f32.mrf.mxu0
        %v1041 = vadd.f32 0.0, %v1040
        %v1042 = vpop.f32.mrf.mxu0
        %1043 = vmatprep.mubr.f32.mxu0 0.0
        %1044 = vmatmul.mubr.f32.gmra.mxu0 %v972
        %v1045 = vpop.f32.mrf.mxu0
        %v1046 = vadd.f32 0.0, %v1045
        %v1047 = vpop.f32.mrf.mxu0
        %1048 = vdwg.mxu0
        %v1049 = vadd.f32 %v857, %v1041
        %v1050 = vadd.f32 %v862, %v1046
        %s1051 = sld [smem:[#allocation12 + $0x9]]
        %v1052 = vstv %s1051
        %v1053 = vmul.f32 %v1052, %v490
        %v1054 = vmul.f32 %v1052, %v491
        %s1055 = sld [smem:[#allocation12 + $0xa]]
        %v1056 = vstv %s1055
        %v1057 = vmul.f32 %v1056, %v493
        %v1058 = vmul.f32 %v1056, %v494
        %v1059 = vadd.f32 %v1053, %v1057
        %v1060 = vadd.f32 %v1054, %v1058
        %s1061 = sld [smem:[#allocation12 + $0xb]]
        %v1062 = vstv %s1061
        %v1063 = vmul.f32 %v1062, %v496
        %v1064 = vmul.f32 %v1062, %v497
        %v1065 = vadd.f32 %v1059, %v1063
        %v1066 = vadd.f32 %v1060, %v1064
        %s1067 = scalar_lea.vmem [#allocation9], 48
        %v1068 = vld [vmem:[%s1067] sm:$0xff]
        %v1069 = vld [vmem:[%s1067 + $0x8] sm:$0xff]
        %v1071 = vsel %vm516, %v1065, 0
        %v1074 = vsel %vm516, %v1066, 0
        %1076 = vmatprep.subr.mxu0 0.0
        %1077 = vmatpush1.msra.mxu0 0.0
        %1078 = vmatprep.subr.mxu0 0.0
        %1079 = vmatpush1.msra.mxu0 0.0
        %1080 = vmatprep.subr.mxu0 0.0
        %1081 = vmatpush1.msra.mxu0 0.0
        %1082 = vmatprep.subr.mxu0 0.0
        %1083 = vmatpush1.msra.mxu0 0.0
        %1084 = vmatprep.subr.mxu0 0.0
        %1085 = vmatpush1.msra.mxu0 0.0
        %1086 = vmatprep.subr.mxu0 0.0
        %1087 = vmatpush1.msra.mxu0 0.0
        %1088 = vmatprep.subr.mxu0 0.0
        %1089 = vmatpush1.msra.mxu0 0.0
        %1090 = vmatprep.subr.mxu0 0.0
        %1091 = vmatpush1.msra.mxu0 0.0
        %1092 = vmatprep.subr.mxu0 0.0
        %1093 = vmatpush1.msra.mxu0 0.0
        %1094 = vmatprep.subr.mxu0 0.0
        %1095 = vmatpush1.msra.mxu0 0.0
        %1096 = vmatprep.subr.mxu0 0.0
        %1097 = vmatpush1.msra.mxu0 0.0
        %1098 = vmatprep.subr.mxu0 0.0
        %1099 = vmatpush1.msra.mxu0 0.0
        %1100 = vmatprep.subr.mxu0 0.0
        %1101 = vmatpush1.msra.mxu0 0.0
        %1102 = vmatprep.subr.mxu0 0.0
        %1103 = vmatpush1.msra.mxu0 0.0
        %1104 = vmatprep.subr.mxu0 0.0
        %1105 = vmatpush1.msra.mxu0 %v1069
        %1106 = vmatprep.subr.mxu0 0.0
        %1107 = vmatpush1.msra.mxu0 %v1068
        %1108 = vmatprep.subr.mxu0 0.0
        %1109 = vmatpush2.msra.mxu0 0.0
        %1110 = vmatprep.subr.mxu0 0.0
        %1111 = vmatpush2.msra.mxu0 0.0
        %1112 = vmatprep.subr.mxu0 0.0
        %1113 = vmatpush2.msra.mxu0 0.0
        %1114 = vmatprep.subr.mxu0 0.0
        %1115 = vmatpush2.msra.mxu0 0.0
        %1116 = vmatprep.subr.mxu0 0.0
        %1117 = vmatpush2.msra.mxu0 0.0
        %1118 = vmatprep.subr.mxu0 0.0
        %1119 = vmatpush2.msra.mxu0 0.0
        %1120 = vmatprep.subr.mxu0 0.0
        %1121 = vmatpush2.msra.mxu0 0.0
        %1122 = vmatprep.subr.mxu0 0.0
        %1123 = vmatpush2.msra.mxu0 0.0
        %1124 = vmatprep.subr.mxu0 0.0
        %1125 = vmatpush2.msra.mxu0 0.0
        %1126 = vmatprep.subr.mxu0 0.0
        %1127 = vmatpush2.msra.mxu0 0.0
        %1128 = vmatprep.subr.mxu0 0.0
        %1129 = vmatpush2.msra.mxu0 0.0
        %1130 = vmatprep.subr.mxu0 0.0
        %1131 = vmatpush2.msra.mxu0 0.0
        %1132 = vmatprep.subr.mxu0 0.0
        %1133 = vmatpush2.msra.mxu0 0.0
        %1134 = vmatprep.subr.mxu0 0.0
        %1135 = vmatpush2.msra.mxu0 0.0
        %1136 = vmatprep.subr.mxu0 0.0
        %1137 = vmatpush2.msra.mxu0 0.0
        %1138 = vmatprep.subr.mxu0 0.0
        %1139 = vmatpush2.msra.mxu0 0.0
        %1140 = vmatprep.mubr.f32.mxu0 0.0
        %1141 = vmatmul.mubr.f32.gmra.mxu0 %v1071
        %v1142 = vpop.f32.mrf.mxu0
        %v1143 = vadd.f32 0.0, %v1142
        %v1144 = vpop.f32.mrf.mxu0
        %1145 = vmatprep.mubr.f32.mxu0 0.0
        %1146 = vmatmul.mubr.f32.gmra.mxu0 %v1074
        %v1147 = vpop.f32.mrf.mxu0
        %v1148 = vadd.f32 0.0, %v1147
        %v1149 = vpop.f32.mrf.mxu0
        %1150 = vdwg.mxu0
        %s1151 = scalar_lea.vmem [#allocation10], 48
        %v1152 = vld [vmem:[%s1151] sm:$0xff]
        %v1153 = vld [vmem:[%s1151 + $0x8] sm:$0xff]
        %v1155 = vsel %vm516, %v1152, 0
        %v1158 = vsel %vm516, %v1153, 0
        %1160 = vmatprep.subr.mxu0 0.0
        %1161 = vmatpush1.msra.mxu0 0.0
        %1162 = vmatprep.subr.mxu0 0.0
        %1163 = vmatpush1.msra.mxu0 0.0
        %1164 = vmatprep.subr.mxu0 0.0
        %1165 = vmatpush1.msra.mxu0 0.0
        %1166 = vmatprep.subr.mxu0 0.0
        %1167 = vmatpush1.msra.mxu0 0.0
        %1168 = vmatprep.subr.mxu0 0.0
        %1169 = vmatpush1.msra.mxu0 0.0
        %1170 = vmatprep.subr.mxu0 0.0
        %1171 = vmatpush1.msra.mxu0 0.0
        %1172 = vmatprep.subr.mxu0 0.0
        %1173 = vmatpush1.msra.mxu0 0.0
        %1174 = vmatprep.subr.mxu0 0.0
        %1175 = vmatpush1.msra.mxu0 0.0
        %1176 = vmatprep.subr.mxu0 0.0
        %1177 = vmatpush1.msra.mxu0 0.0
        %1178 = vmatprep.subr.mxu0 0.0
        %1179 = vmatpush1.msra.mxu0 0.0
        %1180 = vmatprep.subr.mxu0 0.0
        %1181 = vmatpush1.msra.mxu0 0.0
        %1182 = vmatprep.subr.mxu0 0.0
        %1183 = vmatpush1.msra.mxu0 0.0
        %1184 = vmatprep.subr.mxu0 0.0
        %1185 = vmatpush1.msra.mxu0 0.0
        %1186 = vmatprep.subr.mxu0 0.0
        %1187 = vmatpush1.msra.mxu0 0.0
        %1188 = vmatprep.subr.mxu0 0.0
        %1189 = vmatpush1.msra.mxu0 %v1148
        %1190 = vmatprep.subr.mxu0 0.0
        %1191 = vmatpush1.msra.mxu0 %v1143
        %1192 = vmatprep.subr.mxu0 0.0
        %1193 = vmatpush2.msra.mxu0 0.0
        %1194 = vmatprep.subr.mxu0 0.0
        %1195 = vmatpush2.msra.mxu0 0.0
        %1196 = vmatprep.subr.mxu0 0.0
        %1197 = vmatpush2.msra.mxu0 0.0
        %1198 = vmatprep.subr.mxu0 0.0
        %1199 = vmatpush2.msra.mxu0 0.0
        %1200 = vmatprep.subr.mxu0 0.0
        %1201 = vmatpush2.msra.mxu0 0.0
        %1202 = vmatprep.subr.mxu0 0.0
        %1203 = vmatpush2.msra.mxu0 0.0
        %1204 = vmatprep.subr.mxu0 0.0
        %1205 = vmatpush2.msra.mxu0 0.0
        %1206 = vmatprep.subr.mxu0 0.0
        %1207 = vmatpush2.msra.mxu0 0.0
        %1208 = vmatprep.subr.mxu0 0.0
        %1209 = vmatpush2.msra.mxu0 0.0
        %1210 = vmatprep.subr.mxu0 0.0
        %1211 = vmatpush2.msra.mxu0 0.0
        %1212 = vmatprep.subr.mxu0 0.0
        %1213 = vmatpush2.msra.mxu0 0.0
        %1214 = vmatprep.subr.mxu0 0.0
        %1215 = vmatpush2.msra.mxu0 0.0
        %1216 = vmatprep.subr.mxu0 0.0
        %1217 = vmatpush2.msra.mxu0 0.0
        %1218 = vmatprep.subr.mxu0 0.0
        %1219 = vmatpush2.msra.mxu0 0.0
        %1220 = vmatprep.subr.mxu0 0.0
        %1221 = vmatpush2.msra.mxu0 0.0
        %1222 = vmatprep.subr.mxu0 0.0
        %1223 = vmatpush2.msra.mxu0 0.0
        %1224 = vmatprep.mubr.f32.mxu0 0.0
        %1225 = vmatmul.mubr.f32.gmra.mxu0 %v1155
        %v1226 = vpop.f32.mrf.mxu0
        %v1227 = vadd.f32 0.0, %v1226
        %v1228 = vpop.f32.mrf.mxu0
        %1229 = vmatprep.mubr.f32.mxu0 0.0
        %1230 = vmatmul.mubr.f32.gmra.mxu0 %v1158
        %v1231 = vpop.f32.mrf.mxu0
        %v1232 = vadd.f32 0.0, %v1231
        %v1233 = vpop.f32.mrf.mxu0
        %1234 = vdwg.mxu0
        %v1235 = vadd.f32 %v1049, %v1227
        %v1236 = vadd.f32 %v1050, %v1232
        %s1237 = sld [smem:[#allocation2]]
        %v1238 = vmul.f32 %v482, %v1235
        %v1239 = vmul.f32 %v483, %v1236
        %v1240 = vstv %s1237
        %v1241 = vadd.f32 %v1238, %v1240
        %v1242 = vadd.f32 %v1239, %v1240
        %v1243 = vmax.f32 %v1241, 0.0
        %v1244 = vmax.f32 %v1242, 0.0
        %v1245 = vmul.f32 %v484, %v1235
        %v1246 = vmul.f32 %v485, %v1236
        %v1247 = vadd.f32 %v1245, %v1240
        %v1248 = vadd.f32 %v1246, %v1240
        %v1249 = vmax.f32 %v1247, 0.0
        %v1250 = vmax.f32 %v1248, 0.0
        %v1251 = vmul.f32 %v486, %v1235
        %v1252 = vmul.f32 %v487, %v1236
        %v1253 = vadd.f32 %v1251, %v1240
        %v1254 = vadd.f32 %v1252, %v1240
        %v1255 = vmax.f32 %v1253, 0.0
        %v1256 = vmax.f32 %v1254, 0.0
        %v1257 = vmul.f32 %v488, %v1235
        %v1258 = vmul.f32 %v489, %v1236
        %v1259 = vadd.f32 %v1257, %v1240
        %v1260 = vadd.f32 %v1258, %v1240
        %v1261 = vmax.f32 %v1259, 0.0
        %v1262 = vmax.f32 %v1260, 0.0
        %s1263 = sld [smem:[#allocation13]]
        %v1264 = vstv %s1263
        %v1265 = vmul.f32 %v1264, %v1243
        %v1266 = vmul.f32 %v1264, %v1244
        %s1267 = sld [smem:[#allocation13 + $0x1]]
        %v1268 = vstv %s1267
        %v1269 = vmul.f32 %v1268, %v1249
        %v1270 = vmul.f32 %v1268, %v1250
        %v1271 = vadd.f32 %v1265, %v1269
        %v1272 = vadd.f32 %v1266, %v1270
        %s1273 = sld [smem:[#allocation13 + $0x2]]
        %v1274 = vstv %s1273
        %v1275 = vmul.f32 %v1274, %v1255
        %v1276 = vmul.f32 %v1274, %v1256
        %v1277 = vadd.f32 %v1271, %v1275
        %v1278 = vadd.f32 %v1272, %v1276
        %s1279 = sld [smem:[#allocation13 + $0x3]]
        %v1280 = vstv %s1279
        %v1281 = vmul.f32 %v1280, %v1261
        %v1282 = vmul.f32 %v1280, %v1262
        %v1283 = vadd.f32 %v1277, %v1281
        %v1284 = vadd.f32 %v1278, %v1282
        %s1285 = sld [smem:[#allocation15]]
        %v1286 = vstv %s1285
        %v1287 = vadd.f32 %v1283, %v1286
        %v1288 = vadd.f32 %v1284, %v1286
        %v1289 = vsub.f32 %v433, %v1287
        %v1290 = vsub.f32 %v434, %v1288
        %1291 = vst.msk [vmem:[%s432] sm:$0xff] %vm516, %v1289
        %1292 = vst.msk [vmem:[%s432 + $0x8] sm:$0xff] %vm516, %v1290
        %s1293 = sld [smem:[#allocation13 + $0x4]]
        %v1294 = vstv %s1293
        %v1295 = vmul.f32 %v1294, %v1243
        %v1296 = vmul.f32 %v1294, %v1244
        %s1297 = sld [smem:[#allocation13 + $0x5]]
        %v1298 = vstv %s1297
        %v1299 = vmul.f32 %v1298, %v1249
        %v1300 = vmul.f32 %v1298, %v1250
        %v1301 = vadd.f32 %v1295, %v1299
        %v1302 = vadd.f32 %v1296, %v1300
        %s1303 = sld [smem:[#allocation13 + $0x6]]
        %v1304 = vstv %s1303
        %v1305 = vmul.f32 %v1304, %v1255
        %v1306 = vmul.f32 %v1304, %v1256
        %v1307 = vadd.f32 %v1301, %v1305
        %v1308 = vadd.f32 %v1302, %v1306
        %s1309 = sld [smem:[#allocation13 + $0x7]]
        %v1310 = vstv %s1309
        %v1311 = vmul.f32 %v1310, %v1261
        %v1312 = vmul.f32 %v1310, %v1262
        %v1313 = vadd.f32 %v1307, %v1311
        %v1314 = vadd.f32 %v1308, %v1312
        %s1315 = sld [smem:[#allocation15 + $0x1]]
        %v1316 = vstv %s1315
        %v1317 = vadd.f32 %v1313, %v1316
        %v1318 = vadd.f32 %v1314, %v1316
        %v1319 = vsub.f32 %v436, %v1317
        %v1320 = vsub.f32 %v437, %v1318
        %s1321 = scalar_lea.vmem %s432, 16 [#allocation16]
        %1322 = vst.msk [vmem:[%s1321] sm:$0xff] %vm516, %v1319
        %1323 = vst.msk [vmem:[%s1321 + $0x8] sm:$0xff] %vm516, %v1320
        %s1324 = sld [smem:[#allocation13 + $0x8]]
        %v1325 = vstv %s1324
        %v1326 = vmul.f32 %v1325, %v1243
        %v1327 = vmul.f32 %v1325, %v1244
        %s1328 = sld [smem:[#allocation13 + $0x9]]
        %v1329 = vstv %s1328
        %v1330 = vmul.f32 %v1329, %v1249
        %v1331 = vmul.f32 %v1329, %v1250
        %v1332 = vadd.f32 %v1326, %v1330
        %v1333 = vadd.f32 %v1327, %v1331
        %s1334 = sld [smem:[#allocation13 + $0xa]]
        %v1335 = vstv %s1334
        %v1336 = vmul.f32 %v1335, %v1255
        %v1337 = vmul.f32 %v1335, %v1256
        %v1338 = vadd.f32 %v1332, %v1336
        %v1339 = vadd.f32 %v1333, %v1337
        %s1340 = sld [smem:[#allocation13 + $0xb]]
        %v1341 = vstv %s1340
        %v1342 = vmul.f32 %v1341, %v1261
        %v1343 = vmul.f32 %v1341, %v1262
        %v1344 = vadd.f32 %v1338, %v1342
        %v1345 = vadd.f32 %v1339, %v1343
        %s1346 = sld [smem:[#allocation15 + $0x2]]
        %v1347 = vstv %s1346
        %v1348 = vadd.f32 %v1344, %v1347
        %v1349 = vadd.f32 %v1345, %v1347
        %v1350 = vsub.f32 %v439, %v1348
        %v1351 = vsub.f32 %v440, %v1349
        %s1352 = scalar_lea.vmem %s432, 32 [#allocation16]
        %1353 = vst.msk [vmem:[%s1352] sm:$0xff] %vm516, %v1350
        %1354 = vst.msk [vmem:[%s1352 + $0x8] sm:$0xff] %vm516, %v1351
        %s1355 = sld [smem:[#allocation13 + $0xc]]
        %v1356 = vstv %s1355
        %v1357 = vmul.f32 %v1356, %v1243
        %v1358 = vmul.f32 %v1356, %v1244
        %s1359 = sld [smem:[#allocation13 + $0xd]]
        %v1360 = vstv %s1359
        %v1361 = vmul.f32 %v1360, %v1249
        %v1362 = vmul.f32 %v1360, %v1250
        %v1363 = vadd.f32 %v1357, %v1361
        %v1364 = vadd.f32 %v1358, %v1362
        %s1365 = sld [smem:[#allocation13 + $0xe]]
        %v1366 = vstv %s1365
        %v1367 = vmul.f32 %v1366, %v1255
        %v1368 = vmul.f32 %v1366, %v1256
        %v1369 = vadd.f32 %v1363, %v1367
        %v1370 = vadd.f32 %v1364, %v1368
        %s1371 = sld [smem:[#allocation13 + $0xf]]
        %v1372 = vstv %s1371
        %v1373 = vmul.f32 %v1372, %v1261
        %v1374 = vmul.f32 %v1372, %v1262
        %v1375 = vadd.f32 %v1369, %v1373
        %v1376 = vadd.f32 %v1370, %v1374
        %s1377 = sld [smem:[#allocation15 + $0x3]]
        %v1378 = vstv %s1377
        %v1379 = vadd.f32 %v1375, %v1378
        %v1380 = vadd.f32 %v1376, %v1378
        %v1381 = vsub.f32 %v442, %v1379
        %v1382 = vsub.f32 %v443, %v1380
        %s1383 = scalar_lea.vmem %s432, 48 [#allocation16]
        %1384 = vst.msk [vmem:[%s1383] sm:$0xff] %vm516, %v1381
        %1385 = vst.msk [vmem:[%s1383 + $0x8] sm:$0xff] %vm516, %v1382
        %s1386 = sand.u32 %s218, 1
        %s1387 = scalar_lea.sflag [#allocation5], %s1386
        %s1388 = sand.u32 %s218, 1
        %s1389 = smul.addr %s1388, 64
        %s1390 = scalar_lea.vmem [#allocation16], %s1389
        // Predicated region
        $region81: #{tpu_custom_call.1} parent=51 // pred_check
          %p1391 = pneg %p228
        $region82: #{tpu_custom_call.1} parent=51 // pred_check_branch
          %1393 = sbr.rel (%p1391) target = $region84
        $region83: #{tpu_custom_call.1} parent=51 // pred_region
          %s1395 = ssub.s32 1024, 1024
          %1396 = vsyncadd %s1387, %s1395
          %s1397 = smul.addr %s32, 8
          %s1398 = smul.addr %s1397, 128
          %s1399 = scalar_lea.hbm %s8, %s1398
          %s1400 = sshll.u32 %s1390, 4
          %s1401 = int_to_ptr.vmem [resolvable:$true] %s1400
          %1406 = dma.vmem_to_hbm [thread:$0]  %s1401, 1024, %s1399, %s1387, 128, 128, 8
        $region84: #{tpu_custom_call.1} parent=51 // pred_fallthru
          _
      $region52: #{tpu_custom_call.1} parent=5 // pred_fallthru
        _
      %p1407 = scmp.le.s32.totalorder 2, %s27
      // Predicated region
      $region85: #{tpu_custom_call.1} parent=5 // pred_check
        %p1408 = pneg %p1407
      $region86: #{tpu_custom_call.1} parent=5 // pred_check_branch
        %1410 = sbr.rel (%p1408) target = $region88
      $region87: #{tpu_custom_call.1} parent=5 // pred_region
        %s1411 = ssub.s32 %s27, 2
        // Predicated region
        $region89: #{tpu_custom_call.1} parent=87 // pred_check
          %p1412 = pneg %p234
        $region90: #{tpu_custom_call.1} parent=87 // pred_check_branch
          %1414 = sbr.rel (%p1412) target = $region92
        $region91: #{tpu_custom_call.1} parent=87 // pred_region
          %s1415 = sand.u32 %s219, 1
          %s1416 = scalar_lea.sflag [#allocation5], %s1415
          %s1417 = sand.u32 %s219, 1
          %s1418 = smul.addr %s1417, 64
          %s1419 = scalar_lea.vmem [#allocation16], %s1418
          %1420 = dma.done %s1416, 1024
        $region92: #{tpu_custom_call.1} parent=87 // pred_fallthru
          _
      $region88: #{tpu_custom_call.1} parent=5 // pred_fallthru
        _
    $region6: #{tpu_custom_call.1} parent=1 // loop_footer
      %s31 = sadd.s32 1, %s27
    $region7: #{tpu_custom_call.1} parent=1 // loop_footer_branch
      %26 = sbr.rel target = $region3
    $region8: #{tpu_custom_call.1} parent=1 // loop_exit
      _
    %1421 = vsyncpa [#allocation4], 1
    %s1422 = scalar_lea.sflag [#allocation4], 1
    %1423 = vsyncpa %s1422, 1
    %1424 = vsyncpa [#allocation8], 1
    %s1425 = scalar_lea.sflag [#allocation8], 1
    %1426 = vsyncpa %s1425, 1
    %1427 = vsyncpa [#allocation11], 1
    %1428 = vsyncpa [#allocation5], 1
    %s1429 = scalar_lea.sflag [#allocation5], 1
    %1430 = vsyncpa %s1429, 1
    %1431 = vsyncpa [#allocation6], 1
    %s1432 = scalar_lea.sflag [#allocation6], 1
    %1433 = vsyncpa %s1432, 1
    %1434 = vsyncpa [#allocation14], 1

</llo_original>
